<compile_context>
chip_gen: v7x
topology: tpu7x:2x2x1
jax: 0.10.0
libtpu: 0.0.40
codegen_flags: <defaults>
</compile_context>

<pallas_src>
import jax
import jax.numpy as jnp
from jax.experimental import pallas as pl
from jax.experimental.pallas import tpu as pltpu

BN_EPS = 1e-5


def _bn_relu(x, gamma, beta):
    """Training-mode BatchNorm1d + fused ReLU in scale/shift form.

    x: [B, H] f32, gamma/beta: [1, H] f32. Statistics accumulated in f32.
    """
    mean = jnp.mean(x, axis=0, keepdims=True)            # [1, H]
    mean_sq = jnp.mean(x * x, axis=0, keepdims=True)      # [1, H]
    var = mean_sq - mean * mean                           # biased variance
    scale = jax.lax.rsqrt(var + BN_EPS) * gamma           # rsqrt -> EUP slot
    shift = beta - mean * scale
    return jnp.maximum(x * scale + shift, 0.0)            # mul+add+max per elem


def hcf_kernel(x_ref, w1_ref, w2_ref, w3_ref, b3_ref, g_ref, be_ref, out_ref):
    g = g_ref[...]       # [1, 2H] f32 = concat(gamma_b1, gamma_b2)
    be = be_ref[...]     # [1, 2H] f32 = concat(beta_b1,  beta_b2)

    # Layer 1: both branches as one block-diagonal bf16 matmul, f32 accumulate.
    h = jnp.dot(x_ref[...], w1_ref[...], preferred_element_type=jnp.float32)
    h = _bn_relu(h, g, be)                                        # [B, 2H] f32

    # Layer 2: block-diagonal bf16 matmul, BN + ReLU.
    h = jnp.dot(h.astype(jnp.bfloat16), w2_ref[...],
                preferred_element_type=jnp.float32)
    h = _bn_relu(h, g, be)                                        # [B, 2H] f32

    # Head: (u1 + v1) @ w3 + b3; the merge is folded into the stacked,
    # zero-padded [2H, 128] weight so the output block stays lane-dense.
    out = jnp.dot(h.astype(jnp.bfloat16), w3_ref[...],
                  preferred_element_type=jnp.float32) + b3_ref[...]
    out_ref[...] = out


def _block_diag(a, b):
    m1, n1 = a.shape
    m2, n2 = b.shape
    top = jnp.concatenate([a, jnp.zeros((m1, n2), a.dtype)], axis=1)
    bot = jnp.concatenate([jnp.zeros((m2, n1), b.dtype), b], axis=1)
    return jnp.concatenate([top, bot], axis=0)


def pack_params(p, out_pad=128):
    """Pack per-layer Hcf parameters into the fused kernel layout.

    Linear biases bu1/bu2/bv1/bv2 are intentionally omitted (exact no-ops
    under training-mode BN). Weights go to bf16; BN affine + head bias stay f32.
    """
    w1 = _block_diag(p["wu1"], p["wv1"]).astype(jnp.bfloat16)     # [2*in, 2H]
    w2 = _block_diag(p["wu2"], p["wv2"]).astype(jnp.bfloat16)     # [2H,   2H]
    w3 = jnp.concatenate([p["w3"], p["w3"]], axis=0)              # [2H, 2]
    w3 = jnp.pad(w3, ((0, 0), (0, out_pad - w3.shape[1]))).astype(jnp.bfloat16)
    b3 = jnp.pad(p["b3"], ((0, 0), (0, out_pad - p["b3"].shape[1])))  # [1,128] f32
    gamma = jnp.concatenate([p["g1"], p["g2"]], axis=1)           # [1, 2H]
    beta = jnp.concatenate([p["be1"], p["be2"]], axis=1)          # [1, 2H]
    return dict(w1=w1, w2=w2, w3=w3, b3=b3, gamma=gamma, beta=beta)


def hcf_forward(u, v, packed, out_pad=128):
    """u, v: [B, in_feature] f32. Returns [B, 2] f32."""
    B = u.shape[0]
    x = jnp.concatenate([u, v], axis=1).astype(jnp.bfloat16)      # [B, 2*in]
    vmem = pl.BlockSpec(memory_space=pltpu.MemorySpace.VMEM)
    args = (x, packed["w1"], packed["w2"], packed["w3"], packed["b3"],
            packed["gamma"], packed["beta"])
    out = pl.pallas_call(
        hcf_kernel,
        out_shape=jax.ShapeDtypeStruct((B, out_pad), jnp.float32),
        in_specs=[vmem] * len(args),
        out_specs=vmem,
    )(*args)
    return out[:, :2]


def init_params(key, in_feature=32, hidden_feature=128):
    """Deterministic init matching nn.Linear / BatchNorm1d parameter shapes.

    Linear weights stored pre-transposed as [in, out]. BN affine parameters are
    randomized (as if trained) so the gamma/beta code path is exercised.
    """
    ks = jax.random.split(key, 9)

    def lin(k, fan_in, fan_out):
        kw, kb = jax.random.split(k)
        bound = 1.0 / jnp.sqrt(fan_in)
        w = jax.random.uniform(kw, (fan_in, fan_out), jnp.float32, -bound, bound)
        b = jax.random.uniform(kb, (1, fan_out), jnp.float32, -bound, bound)
        return w, b

    wu1, bu1 = lin(ks[0], in_feature, hidden_feature)
    wu2, bu2 = lin(ks[1], hidden_feature, hidden_feature)
    wv1, bv1 = lin(ks[2], in_feature, hidden_feature)
    wv2, bv2 = lin(ks[3], hidden_feature, hidden_feature)
    w3, b3 = lin(ks[4], hidden_feature, 2)

    g1 = 1.0 + 0.1 * jax.random.normal(ks[5], (1, hidden_feature), jnp.float32)
    be1 = 0.1 * jax.random.normal(ks[6], (1, hidden_feature), jnp.float32)
    g2 = 1.0 + 0.1 * jax.random.normal(ks[7], (1, hidden_feature), jnp.float32)
    be2 = 0.1 * jax.random.normal(ks[8], (1, hidden_feature), jnp.float32)

    return dict(wu1=wu1, bu1=bu1, wu2=wu2, bu2=bu2,
                wv1=wv1, bv1=bv1, wv2=wv2, bv2=bv2,
                w3=w3, b3=b3, g1=g1, be1=be1, g2=g2, be2=be2)


# ----------------------------- pure-JAX reference ---------------------------

def _bn_ref(x, g, b):
    m = jnp.mean(x, axis=0, keepdims=True)
    var = jnp.mean((x - m) ** 2, axis=0, keepdims=True)
    return (x - m) * jax.lax.rsqrt(var + BN_EPS) * g + b


def hcf_reference(u, v, p, matmul_dtype=jnp.float32):
    """Faithful Hcf forward (training-mode BN, biases included).

    matmul_dtype=bf16 mirrors the kernel's mixed-precision matmuls for a tight
    numerical comparison; f32 gives the exact PyTorch-equivalent forward.
    """
    def mm(a, w):
        return jnp.dot(a.astype(matmul_dtype), w.astype(matmul_dtype),
                       preferred_element_type=jnp.float32)

    u1 = jnp.maximum(_bn_ref(mm(u, p["wu1"]) + p["bu1"], p["g1"], p["be1"]), 0.0)
    u1 = jnp.maximum(_bn_ref(mm(u1, p["wu2"]) + p["bu2"], p["g1"], p["be1"]), 0.0)
    v1 = jnp.maximum(_bn_ref(mm(v, p["wv1"]) + p["bv1"], p["g2"], p["be2"]), 0.0)
    v1 = jnp.maximum(_bn_ref(mm(v1, p["wv2"]) + p["bv2"], p["g2"], p["be2"]), 0.0)
    # (u1 + v1) @ w3 split to mirror the kernel's stacked-weight accumulation.
    return mm(u1, p["w3"]) + mm(v1, p["w3"]) + p["b3"]


if __name__ == "__main__":
    # Batch large enough to give the MXU real rows; still tiny memory-wise.
    B, IN_F, HID = 256, 32, 128
    key = jax.random.PRNGKey(0)
    ku, kv, kp = jax.random.split(key, 3)

    u = jax.random.normal(ku, (B, IN_F), jnp.float32)
    v = jax.random.normal(kv, (B, IN_F), jnp.float32)
    params = init_params(kp, IN_F, HID)
    packed = pack_params(params)

    out = jax.block_until_ready(hcf_forward(u, v, packed))
    assert out.shape == (B, 2), out.shape

    # Tight check vs a reference mirroring the kernel's bf16 matmul precision.
    ref_bf16 = hcf_reference(u, v, params, matmul_dtype=jnp.bfloat16)
    assert jnp.allclose(out, ref_bf16, atol=5e-3, rtol=5e-3), (
        f"max abs err vs bf16-mirror ref: {jnp.max(jnp.abs(out - ref_bf16))}")

    # Looser check vs the exact f32 PyTorch-equivalent forward (bf16 matmul
    # rounding is the only source of difference).
    ref_f32 = hcf_reference(u, v, params, matmul_dtype=jnp.float32)
    assert jnp.allclose(out, ref_f32, atol=1e-1, rtol=1e-1), (
        f"max abs err vs f32 ref: {jnp.max(jnp.abs(out - ref_f32))}")

    print("KERNEL_OK")
</pallas_src>

<mosaic_0001>
module attributes {stable_mosaic.version = 11 : i64} {
  func.func @hcf_kernel(%arg0: memref<256x64xbf16, #tpu.memory_space<vmem>>, %arg1: memref<64x256xbf16, #tpu.memory_space<vmem>>, %arg2: memref<256x256xbf16, #tpu.memory_space<vmem>>, %arg3: memref<256x128xbf16, #tpu.memory_space<vmem>>, %arg4: memref<1x128xf32, #tpu.memory_space<vmem>>, %arg5: memref<1x256xf32, #tpu.memory_space<vmem>>, %arg6: memref<1x256xf32, #tpu.memory_space<vmem>>, %arg7: memref<256x128xf32, #tpu.memory_space<vmem>>) attributes {dimension_semantics = [], scalar_prefetch = 0 : i64, scratch_operands = 0 : i64, tpu.core_type = #tpu.core_type<tc>} {
    %c0 = arith.constant 0 : index
    %c0_0 = arith.constant 0 : index
    %0 = vector.load %arg5[%c0, %c0_0] : memref<1x256xf32, #tpu.memory_space<vmem>>, vector<1x256xf32>
    %c0_1 = arith.constant 0 : index
    %c0_2 = arith.constant 0 : index
    %1 = vector.load %arg6[%c0_1, %c0_2] : memref<1x256xf32, #tpu.memory_space<vmem>>, vector<1x256xf32>
    %c0_3 = arith.constant 0 : index
    %c0_4 = arith.constant 0 : index
    %2 = vector.load %arg0[%c0_3, %c0_4] : memref<256x64xbf16, #tpu.memory_space<vmem>>, vector<256x64xbf16>
    %c0_5 = arith.constant 0 : index
    %c0_6 = arith.constant 0 : index
    %3 = vector.load %arg1[%c0_5, %c0_6] : memref<64x256xbf16, #tpu.memory_space<vmem>>, vector<64x256xbf16>
    %cst = arith.constant dense<0.000000e+00> : vector<256x256xf32>
    %4 = tpu.matmul %2, %3, %cst {dimension_numbers = #tpu.dot_dimension_numbers<[1], [0], [0], [1], [0, 0, 1, 1], [], []>} : vector<256x64xbf16>, vector<64x256xbf16>, vector<256x256xf32> -> vector<256x256xf32>
    %cst_7 = arith.constant dense<0.000000e+00> : vector<256xf32>
    %5 = vector.multi_reduction <add>, %4, %cst_7 [0] : vector<256x256xf32> to vector<256xf32>
    %6 = vector.shape_cast %5 : vector<256xf32> to vector<1x256xf32>
    %cst_8 = arith.constant 2.560000e+02 : f32
    %7 = vector.broadcast %cst_8 : f32 to vector<1x256xf32>
    %8 = arith.divf %6, %7 : vector<1x256xf32>
    %9 = arith.mulf %4, %4 : vector<256x256xf32>
    %cst_9 = arith.constant dense<0.000000e+00> : vector<256xf32>
    %10 = vector.multi_reduction <add>, %9, %cst_9 [0] : vector<256x256xf32> to vector<256xf32>
    %11 = vector.shape_cast %10 : vector<256xf32> to vector<1x256xf32>
    %cst_10 = arith.constant 2.560000e+02 : f32
    %12 = vector.broadcast %cst_10 : f32 to vector<1x256xf32>
    %13 = arith.divf %11, %12 : vector<1x256xf32>
    %14 = arith.mulf %8, %8 : vector<1x256xf32>
    %15 = arith.subf %13, %14 : vector<1x256xf32>
    %cst_11 = arith.constant 9.99999974E-6 : f32
    %16 = vector.broadcast %cst_11 : f32 to vector<1x256xf32>
    %17 = arith.addf %15, %16 : vector<1x256xf32>
    %18 = math.rsqrt %17 : vector<1x256xf32>
    %19 = arith.mulf %18, %0 : vector<1x256xf32>
    %20 = arith.mulf %8, %19 : vector<1x256xf32>
    %21 = arith.subf %1, %20 : vector<1x256xf32>
    %22 = vector.broadcast %19 : vector<1x256xf32> to vector<256x256xf32>
    %23 = arith.mulf %4, %22 : vector<256x256xf32>
    %24 = vector.broadcast %21 : vector<1x256xf32> to vector<256x256xf32>
    %25 = arith.addf %23, %24 : vector<256x256xf32>
    %cst_12 = arith.constant 0.000000e+00 : f32
    %26 = vector.broadcast %cst_12 : f32 to vector<256x256xf32>
    %27 = arith.maximumf %25, %26 : vector<256x256xf32>
    %28 = arith.truncf %27 : vector<256x256xf32> to vector<256x256xbf16>
    %c0_13 = arith.constant 0 : index
    %c0_14 = arith.constant 0 : index
    %29 = vector.load %arg2[%c0_13, %c0_14] : memref<256x256xbf16, #tpu.memory_space<vmem>>, vector<256x256xbf16>
    %cst_15 = arith.constant dense<0.000000e+00> : vector<256x256xf32>
    %30 = tpu.matmul %28, %29, %cst_15 {dimension_numbers = #tpu.dot_dimension_numbers<[1], [0], [0], [1], [0, 0, 1, 1], [], []>} : vector<256x256xbf16>, vector<256x256xbf16>, vector<256x256xf32> -> vector<256x256xf32>
    %cst_16 = arith.constant dense<0.000000e+00> : vector<256xf32>
    %31 = vector.multi_reduction <add>, %30, %cst_16 [0] : vector<256x256xf32> to vector<256xf32>
    %32 = vector.shape_cast %31 : vector<256xf32> to vector<1x256xf32>
    %cst_17 = arith.constant 2.560000e+02 : f32
    %33 = vector.broadcast %cst_17 : f32 to vector<1x256xf32>
    %34 = arith.divf %32, %33 : vector<1x256xf32>
    %35 = arith.mulf %30, %30 : vector<256x256xf32>
    %cst_18 = arith.constant dense<0.000000e+00> : vector<256xf32>
    %36 = vector.multi_reduction <add>, %35, %cst_18 [0] : vector<256x256xf32> to vector<256xf32>
    %37 = vector.shape_cast %36 : vector<256xf32> to vector<1x256xf32>
    %cst_19 = arith.constant 2.560000e+02 : f32
    %38 = vector.broadcast %cst_19 : f32 to vector<1x256xf32>
    %39 = arith.divf %37, %38 : vector<1x256xf32>
    %40 = arith.mulf %34, %34 : vector<1x256xf32>
    %41 = arith.subf %39, %40 : vector<1x256xf32>
    %cst_20 = arith.constant 9.99999974E-6 : f32
    %42 = vector.broadcast %cst_20 : f32 to vector<1x256xf32>
    %43 = arith.addf %41, %42 : vector<1x256xf32>
    %44 = math.rsqrt %43 : vector<1x256xf32>
    %45 = arith.mulf %44, %0 : vector<1x256xf32>
    %46 = arith.mulf %34, %45 : vector<1x256xf32>
    %47 = arith.subf %1, %46 : vector<1x256xf32>
    %48 = vector.broadcast %45 : vector<1x256xf32> to vector<256x256xf32>
    %49 = arith.mulf %30, %48 : vector<256x256xf32>
    %50 = vector.broadcast %47 : vector<1x256xf32> to vector<256x256xf32>
    %51 = arith.addf %49, %50 : vector<256x256xf32>
    %cst_21 = arith.constant 0.000000e+00 : f32
    %52 = vector.broadcast %cst_21 : f32 to vector<256x256xf32>
    %53 = arith.maximumf %51, %52 : vector<256x256xf32>
    %54 = arith.truncf %53 : vector<256x256xf32> to vector<256x256xbf16>
    %c0_22 = arith.constant 0 : index
    %c0_23 = arith.constant 0 : index
    %55 = vector.load %arg3[%c0_22, %c0_23] : memref<256x128xbf16, #tpu.memory_space<vmem>>, vector<256x128xbf16>
    %cst_24 = arith.constant dense<0.000000e+00> : vector<256x128xf32>
    %56 = tpu.matmul %54, %55, %cst_24 {dimension_numbers = #tpu.dot_dimension_numbers<[1], [0], [0], [1], [0, 0, 1, 1], [], []>} : vector<256x256xbf16>, vector<256x128xbf16>, vector<256x128xf32> -> vector<256x128xf32>
    %c0_25 = arith.constant 0 : index
    %c0_26 = arith.constant 0 : index
    %57 = vector.load %arg4[%c0_25, %c0_26] : memref<1x128xf32, #tpu.memory_space<vmem>>, vector<1x128xf32>
    %58 = vector.broadcast %57 : vector<1x128xf32> to vector<256x128xf32>
    %59 = arith.addf %56, %58 : vector<256x128xf32>
    %c0_27 = arith.constant 0 : index
    %c0_28 = arith.constant 0 : index
    %60 = vector.load %arg7[%c0_27, %c0_28] : memref<256x128xf32, #tpu.memory_space<vmem>>, vector<256x128xf32>
    tpu.vector_store %arg7[%c0_27, %c0_28], %59 {strides = array<i32>} : memref<256x128xf32, #tpu.memory_space<vmem>>, vector<256x128xf32>,
    return
  }
}

</mosaic_0001>

<llo_original>
// kernel: tpu_custom_call.1
$region0: #{tpu_custom_call.1}
  #allocation0 [shape = 'u32[]', space=smem, size = 0x4, offset = 0x4, fixed_abs, tag = 'smem constant byte address 0x4 - core index']
  #allocation1 [shape = 'u32[144,128]{1,0:T(1,128)}', space=vmem, size = 0x12000, scoped, tag = 'internal scratch']
  %s0 = inlined_call_operand.vmem [shape: bf16[256,64], index: 0, kind: input, shape index: {}]
  %s1 = inlined_call_operand.vmem [shape: bf16[64,256], index: 1, kind: input, shape index: {}]
  %s2 = inlined_call_operand.hbm [shape: bf16[256,256], index: 2, kind: input, shape index: {}]
  %s3 = inlined_call_operand.vmem [shape: bf16[256,128], index: 3, kind: input, shape index: {}]
  %s4 = inlined_call_operand.vmem [shape: f32[1,128], index: 4, kind: input, shape index: {}]
  %s5 = inlined_call_operand.vmem [shape: f32[1,256], index: 5, kind: input, shape index: {}]
  %s6 = inlined_call_operand.vmem [shape: f32[1,256], index: 6, kind: input, shape index: {}]
  %s7 = inlined_call_operand.hbm [shape: f32[256,128], index: 7, kind: output, shape index: {}]
  %s8 = sld [smem:[#allocation0]]
  $region42: #{tpu_custom_call.1} parent=0
    _
  %s10 = ssub.s32 1, %s8
  %s11 = scalar_select 0, %s10, %s8
  $region1: #{tpu_custom_call.1} parent=0
    #allocation2 [shape = 'u8[131072]{0}', space=vmem, size = 0x20000, scoped, tag = 'input window, operand 2, single buffered']
    #allocation3 [shape = 's32[1]{0}', space=sflag, size = 0x4, scoped, tag = 'scoped memory for tpu_custom_call.1']
    #allocation4 [shape = 's32[1]{0}', space=sflag, size = 0x4, scoped, tag = 'scoped memory for tpu_custom_call.1']
    #allocation5 [shape = 'u8[131072]{0}', space=vmem, size = 0x20000, scoped, tag = 'output window, operand 0, single buffered']
    %12 = vsyncpa [#allocation3], 0
    %13 = vsyncpa [#allocation4], 0
    // Predicated region
    $region2: #{tpu_custom_call.1} parent=1 // pred_check
      _
    $region3: #{tpu_custom_call.1} parent=1 // pred_check_branch
      %15 = sbr.rel (0) target = $region5
    $region4: #{tpu_custom_call.1} parent=1 // pred_region
      _
    $region5: #{tpu_custom_call.1} parent=1 // pred_fallthru
      _
    // Predicated region
    $region6: #{tpu_custom_call.1} parent=1 // pred_check
      _
    $region7: #{tpu_custom_call.1} parent=1 // pred_check_branch
      %17 = sbr.rel (0) target = $region9
    $region8: #{tpu_custom_call.1} parent=1 // pred_region
      _
    $region9: #{tpu_custom_call.1} parent=1 // pred_fallthru
      _
    // Predicated region
    $region10: #{tpu_custom_call.1} parent=1 // pred_check
      _
    $region11: #{tpu_custom_call.1} parent=1 // pred_check_branch
      %19 = sbr.rel (0) target = $region13
    $region12: #{tpu_custom_call.1} parent=1 // pred_region
      %s21 = ssub.s32 4096, 4096
      %22 = vsyncadd [#allocation3], %s21
      %s23 = sshll.u32 [#allocation2], 4
      %s24 = int_to_ptr.vmem [resolvable:$true] %s23
      %29 = dma.hbm_to_vmem [thread:$0]  %s2, 4096, %s24, [#allocation3], 128, 128, 8
    $region13: #{tpu_custom_call.1} parent=1 // pred_fallthru
      _
    // Predicated region
    $region14: #{tpu_custom_call.1} parent=1 // pred_check
      _
    $region15: #{tpu_custom_call.1} parent=1 // pred_check_branch
      %31 = sbr.rel (0) target = $region17
    $region16: #{tpu_custom_call.1} parent=1 // pred_region
      _
    $region17: #{tpu_custom_call.1} parent=1 // pred_fallthru
      _
    // Predicated region
    $region18: #{tpu_custom_call.1} parent=1 // pred_check
      _
    $region19: #{tpu_custom_call.1} parent=1 // pred_check_branch
      %33 = sbr.rel (0) target = $region21
    $region20: #{tpu_custom_call.1} parent=1 // pred_region
      _
    $region21: #{tpu_custom_call.1} parent=1 // pred_fallthru
      _
    // Predicated region
    $region22: #{tpu_custom_call.1} parent=1 // pred_check
      _
    $region23: #{tpu_custom_call.1} parent=1 // pred_check_branch
      %35 = sbr.rel (0) target = $region25
    $region24: #{tpu_custom_call.1} parent=1 // pred_region
      _
    $region25: #{tpu_custom_call.1} parent=1 // pred_fallthru
      _
    // Predicated region
    $region26: #{tpu_custom_call.1} parent=1 // pred_check
      _
    $region27: #{tpu_custom_call.1} parent=1 // pred_check_branch
      %37 = sbr.rel (0) target = $region29
    $region28: #{tpu_custom_call.1} parent=1 // pred_region
      _
    $region29: #{tpu_custom_call.1} parent=1 // pred_fallthru
      _
    // Predicated region
    $region30: #{tpu_custom_call.1} parent=1 // pred_check
      _
    $region31: #{tpu_custom_call.1} parent=1 // pred_check_branch
      %39 = sbr.rel (0) target = $region33
    $region32: #{tpu_custom_call.1} parent=1 // pred_region
      %40 = dma.done [#allocation3], 4096
    $region33: #{tpu_custom_call.1} parent=1 // pred_fallthru
      _
    %v42 = vld [vmem:[%s5] sm:$0x3]
    %v43 = vld [vmem:[%s6] sm:$0x3]
    %v44 = vld [vmem:[%s0] sm:$0xf]
    %v45 = vld [vmem:[%s0 + $0x4] sm:$0xf]
    %v46 = vld [vmem:[%s0 + $0x8] sm:$0xf]
    %v47 = vld [vmem:[%s0 + $0xc] sm:$0xf]
    %v48 = vld [vmem:[%s0 + $0x10] sm:$0xf]
    %v49 = vld [vmem:[%s0 + $0x14] sm:$0xf]
    %v50 = vld [vmem:[%s0 + $0x18] sm:$0xf]
    %v51 = vld [vmem:[%s0 + $0x1c] sm:$0xf]
    %v52 = vld [vmem:[%s0 + $0x20] sm:$0xf]
    %v53 = vld [vmem:[%s0 + $0x24] sm:$0xf]
    %v54 = vld [vmem:[%s0 + $0x28] sm:$0xf]
    %v55 = vld [vmem:[%s0 + $0x2c] sm:$0xf]
    %v56 = vld [vmem:[%s0 + $0x30] sm:$0xf]
    %v57 = vld [vmem:[%s0 + $0x34] sm:$0xf]
    %v58 = vld [vmem:[%s0 + $0x38] sm:$0xf]
    %v59 = vld [vmem:[%s0 + $0x3c] sm:$0xf]
    %v60 = vld [vmem:[%s0 + $0x40] sm:$0xf]
    %v61 = vld [vmem:[%s0 + $0x44] sm:$0xf]
    %v62 = vld [vmem:[%s0 + $0x48] sm:$0xf]
    %v63 = vld [vmem:[%s0 + $0x4c] sm:$0xf]
    %v64 = vld [vmem:[%s0 + $0x50] sm:$0xf]
    %v65 = vld [vmem:[%s0 + $0x54] sm:$0xf]
    %v66 = vld [vmem:[%s0 + $0x58] sm:$0xf]
    %v67 = vld [vmem:[%s0 + $0x5c] sm:$0xf]
    %v68 = vld [vmem:[%s0 + $0x60] sm:$0xf]
    %v69 = vld [vmem:[%s0 + $0x64] sm:$0xf]
    %v70 = vld [vmem:[%s0 + $0x68] sm:$0xf]
    %v71 = vld [vmem:[%s0 + $0x6c] sm:$0xf]
    %v72 = vld [vmem:[%s0 + $0x70] sm:$0xf]
    %v73 = vld [vmem:[%s0 + $0x74] sm:$0xf]
    %v74 = vld [vmem:[%s0 + $0x78] sm:$0xf]
    %v75 = vld [vmem:[%s0 + $0x7c] sm:$0xf]
    %v76 = vld [vmem:[%s1] sm:$0xff]
    %v77 = vld [vmem:[%s1 + $0x8] sm:$0xff]
    %v78 = vld [vmem:[%s1 + $0x10] sm:$0xff]
    %v79 = vld [vmem:[%s1 + $0x18] sm:$0xff]
    %v80 = vld [vmem:[%s1 + $0x20] sm:$0xff]
    %v81 = vld [vmem:[%s1 + $0x28] sm:$0xff]
    %v82 = vld [vmem:[%s1 + $0x30] sm:$0xff]
    %v83 = vld [vmem:[%s1 + $0x38] sm:$0xff]
    %v116 = vunpack.c.l.b16 %v44
    %v117 = vunpack.c.l.b16 %v45
    %v118 = vunpack.c.l.b16 %v46
    %v119 = vunpack.c.l.b16 %v47
    %v120 = vunpack.c.l.b16 %v48
    %v121 = vunpack.c.l.b16 %v49
    %v122 = vunpack.c.l.b16 %v50
    %v123 = vunpack.c.l.b16 %v51
    %v124 = vunpack.c.l.b16 %v52
    %v125 = vunpack.c.l.b16 %v53
    %v126 = vunpack.c.l.b16 %v54
    %v127 = vunpack.c.l.b16 %v55
    %v128 = vunpack.c.l.b16 %v56
    %v129 = vunpack.c.l.b16 %v57
    %v130 = vunpack.c.l.b16 %v58
    %v131 = vunpack.c.l.b16 %v59
    %v132 = vunpack.c.l.b16 %v60
    %v133 = vunpack.c.l.b16 %v61
    %v134 = vunpack.c.l.b16 %v62
    %v135 = vunpack.c.l.b16 %v63
    %v136 = vunpack.c.l.b16 %v64
    %v137 = vunpack.c.l.b16 %v65
    %v138 = vunpack.c.l.b16 %v66
    %v139 = vunpack.c.l.b16 %v67
    %v140 = vunpack.c.l.b16 %v68
    %v141 = vunpack.c.l.b16 %v69
    %v142 = vunpack.c.l.b16 %v70
    %v143 = vunpack.c.l.b16 %v71
    %v144 = vunpack.c.l.b16 %v72
    %v145 = vunpack.c.l.b16 %v73
    %v146 = vunpack.c.l.b16 %v74
    %v147 = vunpack.c.l.b16 %v75
    %v148 = vpack.c.b16 %v117, %v116
    %v149 = vpack.c.b16 %v119, %v118
    %v150 = vpack.c.b16 %v121, %v120
    %v151 = vpack.c.b16 %v123, %v122
    %v152 = vpack.c.b16 %v125, %v124
    %v153 = vpack.c.b16 %v127, %v126
    %v154 = vpack.c.b16 %v129, %v128
    %v155 = vpack.c.b16 %v131, %v130
    %v156 = vpack.c.b16 %v133, %v132
    %v157 = vpack.c.b16 %v135, %v134
    %v158 = vpack.c.b16 %v137, %v136
    %v159 = vpack.c.b16 %v139, %v138
    %v160 = vpack.c.b16 %v141, %v140
    %v161 = vpack.c.b16 %v143, %v142
    %v162 = vpack.c.b16 %v145, %v144
    %v163 = vpack.c.b16 %v147, %v146
    %v172 = vunpack.c.l.b16 %v76
    %v173 = vunpack.c.h.b16 %v76
    %v174 = vunpack.c.l.b16 %v77
    %v175 = vunpack.c.h.b16 %v77
    %v176 = vunpack.c.l.b16 %v78
    %v177 = vunpack.c.h.b16 %v78
    %v178 = vunpack.c.l.b16 %v79
    %v179 = vunpack.c.h.b16 %v79
    %v180 = vunpack.c.l.b16 %v80
    %v181 = vunpack.c.h.b16 %v80
    %v182 = vunpack.c.l.b16 %v81
    %v183 = vunpack.c.h.b16 %v81
    %v184 = vunpack.c.l.b16 %v82
    %v185 = vunpack.c.h.b16 %v82
    %v186 = vunpack.c.l.b16 %v83
    %v187 = vunpack.c.h.b16 %v83
    %v188 = vpack.c.b16 %v174, %v172
    %v189 = vpack.c.b16 %v175, %v173
    %v190 = vpack.c.b16 %v178, %v176
    %v191 = vpack.c.b16 %v179, %v177
    %v192 = vpack.c.b16 %v182, %v180
    %v193 = vpack.c.b16 %v183, %v181
    %v194 = vpack.c.b16 %v186, %v184
    %v195 = vpack.c.b16 %v187, %v185
    %vm204 = vcmask 523264
    %v206 = vsel %vm204, %v148, 0
    %v209 = vsel %vm204, %v149, 0
    %v212 = vsel %vm204, %v150, 0
    %v215 = vsel %vm204, %v151, 0
    %v218 = vsel %vm204, %v152, 0
    %v221 = vsel %vm204, %v153, 0
    %v224 = vsel %vm204, %v154, 0
    %v227 = vsel %vm204, %v155, 0
    %v230 = vsel %vm204, %v156, 0
    %v233 = vsel %vm204, %v157, 0
    %v236 = vsel %vm204, %v158, 0
    %v239 = vsel %vm204, %v159, 0
    %v242 = vsel %vm204, %v160, 0
    %v245 = vsel %vm204, %v161, 0
    %v248 = vsel %vm204, %v162, 0
    %v251 = vsel %vm204, %v163, 0
    %253 = vmatprep.subr.bf16.mxu0 %v189
    %254 = vmatpush1.bf16.msra.mxu0 %v188
    %255 = vmatprep.subr.bf16.mxu0 %v191
    %256 = vmatpush1.bf16.msra.mxu0 %v190
    %257 = vmatprep.subr.bf16.mxu0 %v193
    %258 = vmatpush1.bf16.msra.mxu0 %v192
    %259 = vmatprep.subr.bf16.mxu0 %v195
    %260 = vmatpush1.bf16.msra.mxu0 %v194
    %261 = vmatprep.subr.bf16.mxu0 0
    %262 = vmatpush1.bf16.msra.mxu0 0
    %263 = vmatprep.subr.bf16.mxu0 0
    %264 = vmatpush1.bf16.msra.mxu0 0
    %265 = vmatprep.subr.bf16.mxu0 0
    %266 = vmatpush1.bf16.msra.mxu0 0
    %267 = vmatprep.subr.bf16.mxu0 0
    %268 = vmatpush1.bf16.msra.mxu0 0
    %269 = vmatprep.subr.bf16.mxu0 0
    %270 = vmatpush1.bf16.msra.mxu0 0
    %271 = vmatprep.subr.bf16.mxu0 0
    %272 = vmatpush1.bf16.msra.mxu0 0
    %273 = vmatprep.subr.bf16.mxu0 0
    %274 = vmatpush1.bf16.msra.mxu0 0
    %275 = vmatprep.subr.bf16.mxu0 0
    %276 = vmatpush1.bf16.msra.mxu0 0
    %277 = vmatprep.subr.bf16.mxu0 0
    %278 = vmatpush1.bf16.msra.mxu0 0
    %279 = vmatprep.subr.bf16.mxu0 0
    %280 = vmatpush1.bf16.msra.mxu0 0
    %281 = vmatprep.subr.bf16.mxu0 0
    %282 = vmatpush1.bf16.msra.mxu0 0
    %283 = vmatprep.subr.bf16.mxu0 0
    %284 = vmatpush1.bf16.msra.mxu0 0
    %285 = vmatprep.mubr.bf16.mxu0 0
    %286 = vmatmul.mubr.bf16.gmra.mrb[0].mxu0 %v206
    %v287 = vpop.f32.mrb[0].mxu0
    %v288 = vadd.f32 0.0, %v287
    %v289 = vpop.f32.mrb[0].mxu0
    %v290 = vadd.f32 0.0, %v289
    %v291 = vpop.f32.mrb[0].mxu0
    %v292 = vadd.f32 0.0, %v291
    %v293 = vpop.f32.mrb[0].mxu0
    %v294 = vadd.f32 0.0, %v293
    %295 = vmatprep.mubr.bf16.mxu0 0
    %296 = vmatmul.mubr.bf16.gmra.mrb[0].mxu0 %v209
    %v297 = vpop.f32.mrb[0].mxu0
    %v298 = vadd.f32 0.0, %v297
    %v299 = vpop.f32.mrb[0].mxu0
    %v300 = vadd.f32 0.0, %v299
    %v301 = vpop.f32.mrb[0].mxu0
    %v302 = vadd.f32 0.0, %v301
    %v303 = vpop.f32.mrb[0].mxu0
    %v304 = vadd.f32 0.0, %v303
    %305 = vmatprep.mubr.bf16.mxu0 0
    %306 = vmatmul.mubr.bf16.gmra.mrb[0].mxu0 %v212
    %v307 = vpop.f32.mrb[0].mxu0
    %v308 = vadd.f32 0.0, %v307
    %v309 = vpop.f32.mrb[0].mxu0
    %v310 = vadd.f32 0.0, %v309
    %v311 = vpop.f32.mrb[0].mxu0
    %v312 = vadd.f32 0.0, %v311
    %v313 = vpop.f32.mrb[0].mxu0
    %v314 = vadd.f32 0.0, %v313
    %315 = vmatprep.mubr.bf16.mxu0 0
    %316 = vmatmul.mubr.bf16.gmra.mrb[0].mxu0 %v215
    %v317 = vpop.f32.mrb[0].mxu0
    %v318 = vadd.f32 0.0, %v317
    %v319 = vpop.f32.mrb[0].mxu0
    %v320 = vadd.f32 0.0, %v319
    %v321 = vpop.f32.mrb[0].mxu0
    %v322 = vadd.f32 0.0, %v321
    %v323 = vpop.f32.mrb[0].mxu0
    %v324 = vadd.f32 0.0, %v323
    %325 = vmatprep.mubr.bf16.mxu0 0
    %326 = vmatmul.mubr.bf16.gmra.mrb[0].mxu0 %v218
    %v327 = vpop.f32.mrb[0].mxu0
    %v328 = vadd.f32 0.0, %v327
    %v329 = vpop.f32.mrb[0].mxu0
    %v330 = vadd.f32 0.0, %v329
    %v331 = vpop.f32.mrb[0].mxu0
    %v332 = vadd.f32 0.0, %v331
    %v333 = vpop.f32.mrb[0].mxu0
    %v334 = vadd.f32 0.0, %v333
    %335 = vmatprep.mubr.bf16.mxu0 0
    %336 = vmatmul.mubr.bf16.gmra.mrb[0].mxu0 %v221
    %v337 = vpop.f32.mrb[0].mxu0
    %v338 = vadd.f32 0.0, %v337
    %v339 = vpop.f32.mrb[0].mxu0
    %v340 = vadd.f32 0.0, %v339
    %v341 = vpop.f32.mrb[0].mxu0
    %v342 = vadd.f32 0.0, %v341
    %v343 = vpop.f32.mrb[0].mxu0
    %v344 = vadd.f32 0.0, %v343
    %345 = vmatprep.mubr.bf16.mxu0 0
    %346 = vmatmul.mubr.bf16.gmra.mrb[0].mxu0 %v224
    %v347 = vpop.f32.mrb[0].mxu0
    %v348 = vadd.f32 0.0, %v347
    %v349 = vpop.f32.mrb[0].mxu0
    %v350 = vadd.f32 0.0, %v349
    %v351 = vpop.f32.mrb[0].mxu0
    %v352 = vadd.f32 0.0, %v351
    %v353 = vpop.f32.mrb[0].mxu0
    %v354 = vadd.f32 0.0, %v353
    %355 = vmatprep.mubr.bf16.mxu0 0
    %356 = vmatmul.mubr.bf16.gmra.mrb[0].mxu0 %v227
    %v357 = vpop.f32.mrb[0].mxu0
    %v358 = vadd.f32 0.0, %v357
    %v359 = vpop.f32.mrb[0].mxu0
    %v360 = vadd.f32 0.0, %v359
    %v361 = vpop.f32.mrb[0].mxu0
    %v362 = vadd.f32 0.0, %v361
    %v363 = vpop.f32.mrb[0].mxu0
    %v364 = vadd.f32 0.0, %v363
    %365 = vmatprep.mubr.bf16.mxu0 0
    %366 = vmatmul.mubr.bf16.gmra.mrb[0].mxu0 %v230
    %v367 = vpop.f32.mrb[0].mxu0
    %v368 = vadd.f32 0.0, %v367
    %v369 = vpop.f32.mrb[0].mxu0
    %v370 = vadd.f32 0.0, %v369
    %v371 = vpop.f32.mrb[0].mxu0
    %v372 = vadd.f32 0.0, %v371
    %v373 = vpop.f32.mrb[0].mxu0
    %v374 = vadd.f32 0.0, %v373
    %375 = vmatprep.mubr.bf16.mxu0 0
    %376 = vmatmul.mubr.bf16.gmra.mrb[0].mxu0 %v233
    %v377 = vpop.f32.mrb[0].mxu0
    %v378 = vadd.f32 0.0, %v377
    %v379 = vpop.f32.mrb[0].mxu0
    %v380 = vadd.f32 0.0, %v379
    %v381 = vpop.f32.mrb[0].mxu0
    %v382 = vadd.f32 0.0, %v381
    %v383 = vpop.f32.mrb[0].mxu0
    %v384 = vadd.f32 0.0, %v383
    %385 = vmatprep.mubr.bf16.mxu0 0
    %386 = vmatmul.mubr.bf16.gmra.mrb[0].mxu0 %v236
    %v387 = vpop.f32.mrb[0].mxu0
    %v388 = vadd.f32 0.0, %v387
    %v389 = vpop.f32.mrb[0].mxu0
    %v390 = vadd.f32 0.0, %v389
    %v391 = vpop.f32.mrb[0].mxu0
    %v392 = vadd.f32 0.0, %v391
    %v393 = vpop.f32.mrb[0].mxu0
    %v394 = vadd.f32 0.0, %v393
    %395 = vmatprep.mubr.bf16.mxu0 0
    %396 = vmatmul.mubr.bf16.gmra.mrb[0].mxu0 %v239
    %v397 = vpop.f32.mrb[0].mxu0
    %v398 = vadd.f32 0.0, %v397
    %v399 = vpop.f32.mrb[0].mxu0
    %v400 = vadd.f32 0.0, %v399
    %v401 = vpop.f32.mrb[0].mxu0
    %v402 = vadd.f32 0.0, %v401
    %v403 = vpop.f32.mrb[0].mxu0
    %v404 = vadd.f32 0.0, %v403
    %405 = vmatprep.mubr.bf16.mxu0 0
    %406 = vmatmul.mubr.bf16.gmra.mrb[0].mxu0 %v242
    %v407 = vpop.f32.mrb[0].mxu0
    %v408 = vadd.f32 0.0, %v407
    %v409 = vpop.f32.mrb[0].mxu0
    %v410 = vadd.f32 0.0, %v409
    %v411 = vpop.f32.mrb[0].mxu0
    %v412 = vadd.f32 0.0, %v411
    %v413 = vpop.f32.mrb[0].mxu0
    %v414 = vadd.f32 0.0, %v413
    %415 = vmatprep.mubr.bf16.mxu0 0
    %416 = vmatmul.mubr.bf16.gmra.mrb[0].mxu0 %v245
    %v417 = vpop.f32.mrb[0].mxu0
    %v418 = vadd.f32 0.0, %v417
    %v419 = vpop.f32.mrb[0].mxu0
    %v420 = vadd.f32 0.0, %v419
    %v421 = vpop.f32.mrb[0].mxu0
    %v422 = vadd.f32 0.0, %v421
    %v423 = vpop.f32.mrb[0].mxu0
    %v424 = vadd.f32 0.0, %v423
    %425 = vmatprep.mubr.bf16.mxu0 0
    %426 = vmatmul.mubr.bf16.gmra.mrb[0].mxu0 %v248
    %v427 = vpop.f32.mrb[0].mxu0
    %v428 = vadd.f32 0.0, %v427
    %v429 = vpop.f32.mrb[0].mxu0
    %v430 = vadd.f32 0.0, %v429
    %v431 = vpop.f32.mrb[0].mxu0
    %v432 = vadd.f32 0.0, %v431
    %v433 = vpop.f32.mrb[0].mxu0
    %v434 = vadd.f32 0.0, %v433
    %435 = vmatprep.mubr.bf16.mxu0 0
    %436 = vmatmul.mubr.bf16.gmra.mrb[0].mxu0 %v251
    %v437 = vpop.f32.mrb[0].mxu0
    %v438 = vadd.f32 0.0, %v437
    %v439 = vpop.f32.mrb[0].mxu0
    %v440 = vadd.f32 0.0, %v439
    %v441 = vpop.f32.mrb[0].mxu0
    %v442 = vadd.f32 0.0, %v441
    %v443 = vpop.f32.mrb[0].mxu0
    %v444 = vadd.f32 0.0, %v443
    %445 = vdwg.mxu0
    %v446 = vadd.f32 %v288, %v292
    %v447 = vadd.f32 %v446, %v298
    %v448 = vadd.f32 %v447, %v302
    %v449 = vadd.f32 %v448, %v308
    %v450 = vadd.f32 %v449, %v312
    %v451 = vadd.f32 %v450, %v318
    %v452 = vadd.f32 %v451, %v322
    %v453 = vadd.f32 %v452, %v328
    %v454 = vadd.f32 %v453, %v332
    %v455 = vadd.f32 %v454, %v338
    %v456 = vadd.f32 %v455, %v342
    %v457 = vadd.f32 %v456, %v348
    %v458 = vadd.f32 %v457, %v352
    %v459 = vadd.f32 %v458, %v358
    %v460 = vadd.f32 %v459, %v362
    %v461 = vadd.f32 %v460, %v368
    %v462 = vadd.f32 %v461, %v372
    %v463 = vadd.f32 %v462, %v378
    %v464 = vadd.f32 %v463, %v382
    %v465 = vadd.f32 %v464, %v388
    %v466 = vadd.f32 %v465, %v392
    %v467 = vadd.f32 %v466, %v398
    %v468 = vadd.f32 %v467, %v402
    %v469 = vadd.f32 %v468, %v408
    %v470 = vadd.f32 %v469, %v412
    %v471 = vadd.f32 %v470, %v418
    %v472 = vadd.f32 %v471, %v422
    %v473 = vadd.f32 %v472, %v428
    %v474 = vadd.f32 %v473, %v432
    %v475 = vadd.f32 %v474, %v438
    %v476 = vadd.f32 %v475, %v442
    %v477 = vrot.slane %v476, 4
    %v478 = vadd.f32 %v476, %v477
    %v479 = vrot.slane %v478, 2
    %v480 = vadd.f32 %v478, %v479
    %v481 = vrot.slane %v480, 1
    %v482 = vadd.f32 %v480, %v481
    %v483 = vadd.f32 %v290, %v294
    %v484 = vadd.f32 %v483, %v300
    %v485 = vadd.f32 %v484, %v304
    %v486 = vadd.f32 %v485, %v310
    %v487 = vadd.f32 %v486, %v314
    %v488 = vadd.f32 %v487, %v320
    %v489 = vadd.f32 %v488, %v324
    %v490 = vadd.f32 %v489, %v330
    %v491 = vadd.f32 %v490, %v334
    %v492 = vadd.f32 %v491, %v340
    %v493 = vadd.f32 %v492, %v344
    %v494 = vadd.f32 %v493, %v350
    %v495 = vadd.f32 %v494, %v354
    %v496 = vadd.f32 %v495, %v360
    %v497 = vadd.f32 %v496, %v364
    %v498 = vadd.f32 %v497, %v370
    %v499 = vadd.f32 %v498, %v374
    %v500 = vadd.f32 %v499, %v380
    %v501 = vadd.f32 %v500, %v384
    %v502 = vadd.f32 %v501, %v390
    %v503 = vadd.f32 %v502, %v394
    %v504 = vadd.f32 %v503, %v400
    %v505 = vadd.f32 %v504, %v404
    %v506 = vadd.f32 %v505, %v410
    %v507 = vadd.f32 %v506, %v414
    %v508 = vadd.f32 %v507, %v420
    %v509 = vadd.f32 %v508, %v424
    %v510 = vadd.f32 %v509, %v430
    %v511 = vadd.f32 %v510, %v434
    %v512 = vadd.f32 %v511, %v440
    %v513 = vadd.f32 %v512, %v444
    %v514 = vrot.slane %v513, 4
    %v515 = vadd.f32 %v513, %v514
    %v516 = vrot.slane %v515, 2
    %v517 = vadd.f32 %v515, %v516
    %v518 = vrot.slane %v517, 1
    %v519 = vadd.f32 %v517, %v518
    %v520 = vrcp.pop 256.0
    %v521 = vmul.f32 %v482, %v520
    %v522 = vmul.f32 %v519, %v520
    %v523 = vmul.f32 %v288, %v288
    %v524 = vmul.f32 %v290, %v290
    %v525 = vmul.f32 %v292, %v292
    %v526 = vmul.f32 %v294, %v294
    %v527 = vmul.f32 %v298, %v298
    %v528 = vmul.f32 %v300, %v300
    %v529 = vmul.f32 %v302, %v302
    %v530 = vmul.f32 %v304, %v304
    %v531 = vmul.f32 %v308, %v308
    %v532 = vmul.f32 %v310, %v310
    %v533 = vmul.f32 %v312, %v312
    %v534 = vmul.f32 %v314, %v314
    %v535 = vmul.f32 %v318, %v318
    %v536 = vmul.f32 %v320, %v320
    %v537 = vmul.f32 %v322, %v322
    %v538 = vmul.f32 %v324, %v324
    %v539 = vmul.f32 %v328, %v328
    %v540 = vmul.f32 %v330, %v330
    %v541 = vmul.f32 %v332, %v332
    %v542 = vmul.f32 %v334, %v334
    %v543 = vmul.f32 %v338, %v338
    %v544 = vmul.f32 %v340, %v340
    %v545 = vmul.f32 %v342, %v342
    %v546 = vmul.f32 %v344, %v344
    %v547 = vmul.f32 %v348, %v348
    %v548 = vmul.f32 %v350, %v350
    %v549 = vmul.f32 %v352, %v352
    %v550 = vmul.f32 %v354, %v354
    %v551 = vmul.f32 %v358, %v358
    %v552 = vmul.f32 %v360, %v360
    %v553 = vmul.f32 %v362, %v362
    %v554 = vmul.f32 %v364, %v364
    %v555 = vmul.f32 %v368, %v368
    %v556 = vmul.f32 %v370, %v370
    %v557 = vmul.f32 %v372, %v372
    %v558 = vmul.f32 %v374, %v374
    %v559 = vmul.f32 %v378, %v378
    %v560 = vmul.f32 %v380, %v380
    %v561 = vmul.f32 %v382, %v382
    %v562 = vmul.f32 %v384, %v384
    %v563 = vmul.f32 %v388, %v388
    %v564 = vmul.f32 %v390, %v390
    %v565 = vmul.f32 %v392, %v392
    %v566 = vmul.f32 %v394, %v394
    %v567 = vmul.f32 %v398, %v398
    %v568 = vmul.f32 %v400, %v400
    %v569 = vmul.f32 %v402, %v402
    %v570 = vmul.f32 %v404, %v404
    %v571 = vmul.f32 %v408, %v408
    %v572 = vmul.f32 %v410, %v410
    %v573 = vmul.f32 %v412, %v412
    %v574 = vmul.f32 %v414, %v414
    %v575 = vmul.f32 %v418, %v418
    %v576 = vmul.f32 %v420, %v420
    %v577 = vmul.f32 %v422, %v422
    %v578 = vmul.f32 %v424, %v424
    %v579 = vmul.f32 %v428, %v428
    %v580 = vmul.f32 %v430, %v430
    %v581 = vmul.f32 %v432, %v432
    %v582 = vmul.f32 %v434, %v434
    %v583 = vmul.f32 %v438, %v438
    %v584 = vmul.f32 %v440, %v440
    %v585 = vmul.f32 %v442, %v442
    %v586 = vmul.f32 %v444, %v444
    %v587 = vadd.f32 %v523, %v525
    %v588 = vadd.f32 %v587, %v527
    %v589 = vadd.f32 %v588, %v529
    %v590 = vadd.f32 %v589, %v531
    %v591 = vadd.f32 %v590, %v533
    %v592 = vadd.f32 %v591, %v535
    %v593 = vadd.f32 %v592, %v537
    %v594 = vadd.f32 %v593, %v539
    %v595 = vadd.f32 %v594, %v541
    %v596 = vadd.f32 %v595, %v543
    %v597 = vadd.f32 %v596, %v545
    %v598 = vadd.f32 %v597, %v547
    %v599 = vadd.f32 %v598, %v549
    %v600 = vadd.f32 %v599, %v551
    %v601 = vadd.f32 %v600, %v553
    %v602 = vadd.f32 %v601, %v555
    %v603 = vadd.f32 %v602, %v557
    %v604 = vadd.f32 %v603, %v559
    %v605 = vadd.f32 %v604, %v561
    %v606 = vadd.f32 %v605, %v563
    %v607 = vadd.f32 %v606, %v565
    %v608 = vadd.f32 %v607, %v567
    %v609 = vadd.f32 %v608, %v569
    %v610 = vadd.f32 %v609, %v571
    %v611 = vadd.f32 %v610, %v573
    %v612 = vadd.f32 %v611, %v575
    %v613 = vadd.f32 %v612, %v577
    %v614 = vadd.f32 %v613, %v579
    %v615 = vadd.f32 %v614, %v581
    %v616 = vadd.f32 %v615, %v583
    %v617 = vadd.f32 %v616, %v585
    %v618 = vrot.slane %v617, 4
    %v619 = vadd.f32 %v617, %v618
    %v620 = vrot.slane %v619, 2
    %v621 = vadd.f32 %v619, %v620
    %v622 = vrot.slane %v621, 1
    %v623 = vadd.f32 %v621, %v622
    %v624 = vadd.f32 %v524, %v526
    %v625 = vadd.f32 %v624, %v528
    %v626 = vadd.f32 %v625, %v530
    %v627 = vadd.f32 %v626, %v532
    %v628 = vadd.f32 %v627, %v534
    %v629 = vadd.f32 %v628, %v536
    %v630 = vadd.f32 %v629, %v538
    %v631 = vadd.f32 %v630, %v540
    %v632 = vadd.f32 %v631, %v542
    %v633 = vadd.f32 %v632, %v544
    %v634 = vadd.f32 %v633, %v546
    %v635 = vadd.f32 %v634, %v548
    %v636 = vadd.f32 %v635, %v550
    %v637 = vadd.f32 %v636, %v552
    %v638 = vadd.f32 %v637, %v554
    %v639 = vadd.f32 %v638, %v556
    %v640 = vadd.f32 %v639, %v558
    %v641 = vadd.f32 %v640, %v560
    %v642 = vadd.f32 %v641, %v562
    %v643 = vadd.f32 %v642, %v564
    %v644 = vadd.f32 %v643, %v566
    %v645 = vadd.f32 %v644, %v568
    %v646 = vadd.f32 %v645, %v570
    %v647 = vadd.f32 %v646, %v572
    %v648 = vadd.f32 %v647, %v574
    %v649 = vadd.f32 %v648, %v576
    %v650 = vadd.f32 %v649, %v578
    %v651 = vadd.f32 %v650, %v580
    %v652 = vadd.f32 %v651, %v582
    %v653 = vadd.f32 %v652, %v584
    %v654 = vadd.f32 %v653, %v586
    %v655 = vrot.slane %v654, 4
    %v656 = vadd.f32 %v654, %v655
    %v657 = vrot.slane %v656, 2
    %v658 = vadd.f32 %v656, %v657
    %v659 = vrot.slane %v658, 1
    %v660 = vadd.f32 %v658, %v659
    %v661 = vmul.f32 %v623, %v520
    %v662 = vmul.f32 %v660, %v520
    %v663 = vmul.f32 %v521, %v521
    %v664 = vmul.f32 %v522, %v522
    %v665 = vsub.f32 %v661, %v663
    %v666 = vsub.f32 %v662, %v664
    %v667 = vadd.f32 %v665, 1e-05
    %v668 = vadd.f32 %v666, 1e-05
    %v669 = vrsqrt.pop %v667
    %v670 = vrsqrt.pop %v668
    %v672 = vlaneseq
    %v673 = vshrl.u32 %v672, 7
    %v674 = vsub.s32 0, %v673
    %v675 = vrot.slane %v42, %v674
    %v676 = vlaneseq
    %v677 = vshrl.u32 %v676, 7
    %v678 = vsub.s32 1, %v677
    %v679 = vrot.slane %v42, %v678
    %v682 = vmul.f32 %v669, %v675
    %v683 = vmul.f32 %v670, %v679
    %v684 = vmul.f32 %v521, %v682
    %v685 = vmul.f32 %v522, %v683
    %v688 = vcombine.low %v684, %v685
    %v690 = vunpack.c.l.s4 1966171168
    %v691 = vunpack.c.0.s8 %v690
    %v692 = vlaneseq
    %v693 = vshrl.u32 %v692, 7
    %v694 = vsub.s32 %v691, %v693
    %v695 = vrot.slane %v688, %v694
    %v697 = vunpack.c.l.s4 1966171168
    %v698 = vunpack.c.0.s8 %v697
    %v699 = vlaneseq
    %v700 = vshrl.u32 %v699, 7
    %v701 = vsub.s32 %v698, %v700
    %v702 = vrot.slane %v695, %v701
    %v704 = vsub.f32 %v43, %v702
    %v705 = vlaneseq
    %v706 = vshrl.u32 %v705, 7
    %v707 = vsub.s32 0, %v706
    %v708 = vrot.slane %v682, %v707
    %v709 = vlaneseq
    %v710 = vshrl.u32 %v709, 7
    %v711 = vsub.s32 0, %v710
    %v712 = vrot.slane %v683, %v711
    %v713 = vmul.f32 %v288, %v708
    %v714 = vmul.f32 %v290, %v712
    %v715 = vmul.f32 %v292, %v708
    %v716 = vmul.f32 %v294, %v712
    %v717 = vmul.f32 %v298, %v708
    %v718 = vmul.f32 %v300, %v712
    %v719 = vmul.f32 %v302, %v708
    %v720 = vmul.f32 %v304, %v712
    %v721 = vmul.f32 %v308, %v708
    %v722 = vmul.f32 %v310, %v712
    %v723 = vmul.f32 %v312, %v708
    %v724 = vmul.f32 %v314, %v712
    %v725 = vmul.f32 %v318, %v708
    %v726 = vmul.f32 %v320, %v712
    %v727 = vmul.f32 %v322, %v708
    %v728 = vmul.f32 %v324, %v712
    %v729 = vmul.f32 %v328, %v708
    %v730 = vmul.f32 %v330, %v712
    %v731 = vmul.f32 %v332, %v708
    %v732 = vmul.f32 %v334, %v712
    %v733 = vmul.f32 %v338, %v708
    %v734 = vmul.f32 %v340, %v712
    %v735 = vmul.f32 %v342, %v708
    %v736 = vmul.f32 %v344, %v712
    %v737 = vmul.f32 %v348, %v708
    %v738 = vmul.f32 %v350, %v712
    %v739 = vmul.f32 %v352, %v708
    %v740 = vmul.f32 %v354, %v712
    %v741 = vmul.f32 %v358, %v708
    %v742 = vmul.f32 %v360, %v712
    %v743 = vmul.f32 %v362, %v708
    %v744 = vmul.f32 %v364, %v712
    %v745 = vmul.f32 %v368, %v708
    %v746 = vmul.f32 %v370, %v712
    %v747 = vmul.f32 %v372, %v708
    %v748 = vmul.f32 %v374, %v712
    %v749 = vmul.f32 %v378, %v708
    %v750 = vmul.f32 %v380, %v712
    %v751 = vmul.f32 %v382, %v708
    %v752 = vmul.f32 %v384, %v712
    %v753 = vmul.f32 %v388, %v708
    %v754 = vmul.f32 %v390, %v712
    %v755 = vmul.f32 %v392, %v708
    %v756 = vmul.f32 %v394, %v712
    %v757 = vmul.f32 %v398, %v708
    %v758 = vmul.f32 %v400, %v712
    %v759 = vmul.f32 %v402, %v708
    %v760 = vmul.f32 %v404, %v712
    %v761 = vmul.f32 %v408, %v708
    %v762 = vmul.f32 %v410, %v712
    %v763 = vmul.f32 %v412, %v708
    %v764 = vmul.f32 %v414, %v712
    %v765 = vmul.f32 %v418, %v708
    %v766 = vmul.f32 %v420, %v712
    %v767 = vmul.f32 %v422, %v708
    %v768 = vmul.f32 %v424, %v712
    %v769 = vmul.f32 %v428, %v708
    %v770 = vmul.f32 %v430, %v712
    %v771 = vmul.f32 %v432, %v708
    %v772 = vmul.f32 %v434, %v712
    %v773 = vmul.f32 %v438, %v708
    %v774 = vmul.f32 %v440, %v712
    %v775 = vmul.f32 %v442, %v708
    %v776 = vmul.f32 %v444, %v712
    %v778 = vlaneseq
    %v779 = vshrl.u32 %v778, 7
    %v780 = vsub.s32 0, %v779
    %v781 = vrot.slane %v704, %v780
    %v782 = vlaneseq
    %v783 = vshrl.u32 %v782, 7
    %v784 = vsub.s32 1, %v783
    %v785 = vrot.slane %v704, %v784
    %v788 = vadd.f32 %v713, %v781
    %v789 = vadd.f32 %v714, %v785
    %v790 = vadd.f32 %v715, %v781
    %v791 = vadd.f32 %v716, %v785
    %v792 = vadd.f32 %v717, %v781
    %v793 = vadd.f32 %v718, %v785
    %v794 = vadd.f32 %v719, %v781
    %v795 = vadd.f32 %v720, %v785
    %v796 = vadd.f32 %v721, %v781
    %v797 = vadd.f32 %v722, %v785
    %v798 = vadd.f32 %v723, %v781
    %v799 = vadd.f32 %v724, %v785
    %v800 = vadd.f32 %v725, %v781
    %v801 = vadd.f32 %v726, %v785
    %v802 = vadd.f32 %v727, %v781
    %v803 = vadd.f32 %v728, %v785
    %v804 = vadd.f32 %v729, %v781
    %v805 = vadd.f32 %v730, %v785
    %v806 = vadd.f32 %v731, %v781
    %v807 = vadd.f32 %v732, %v785
    %v808 = vadd.f32 %v733, %v781
    %v809 = vadd.f32 %v734, %v785
    %v810 = vadd.f32 %v735, %v781
    %v811 = vadd.f32 %v736, %v785
    %v812 = vadd.f32 %v737, %v781
    %v813 = vadd.f32 %v738, %v785
    %v814 = vadd.f32 %v739, %v781
    %v815 = vadd.f32 %v740, %v785
    %v816 = vadd.f32 %v741, %v781
    %v817 = vadd.f32 %v742, %v785
    %v818 = vadd.f32 %v743, %v781
    %v819 = vadd.f32 %v744, %v785
    %v820 = vadd.f32 %v745, %v781
    %v821 = vadd.f32 %v746, %v785
    %v822 = vadd.f32 %v747, %v781
    %v823 = vadd.f32 %v748, %v785
    %v824 = vadd.f32 %v749, %v781
    %v825 = vadd.f32 %v750, %v785
    %v826 = vadd.f32 %v751, %v781
    %v827 = vadd.f32 %v752, %v785
    %v828 = vadd.f32 %v753, %v781
    %v829 = vadd.f32 %v754, %v785
    %v830 = vadd.f32 %v755, %v781
    %v831 = vadd.f32 %v756, %v785
    %v832 = vadd.f32 %v757, %v781
    %v833 = vadd.f32 %v758, %v785
    %v834 = vadd.f32 %v759, %v781
    %v835 = vadd.f32 %v760, %v785
    %v836 = vadd.f32 %v761, %v781
    %v837 = vadd.f32 %v762, %v785
    %v838 = vadd.f32 %v763, %v781
    %v839 = vadd.f32 %v764, %v785
    %v840 = vadd.f32 %v765, %v781
    %v841 = vadd.f32 %v766, %v785
    %v842 = vadd.f32 %v767, %v781
    %v843 = vadd.f32 %v768, %v785
    %v844 = vadd.f32 %v769, %v781
    %v845 = vadd.f32 %v770, %v785
    %v846 = vadd.f32 %v771, %v781
    %v847 = vadd.f32 %v772, %v785
    %v848 = vadd.f32 %v773, %v781
    %v849 = vadd.f32 %v774, %v785
    %v850 = vadd.f32 %v775, %v781
    %v851 = vadd.f32 %v776, %v785
    %v852 = vmax.f32 %v788, 0.0
    %v853 = vmax.f32 %v789, 0.0
    %v854 = vmax.f32 %v790, 0.0
    %v855 = vmax.f32 %v791, 0.0
    %v856 = vmax.f32 %v792, 0.0
    %v857 = vmax.f32 %v793, 0.0
    %v858 = vmax.f32 %v794, 0.0
    %v859 = vmax.f32 %v795, 0.0
    %v860 = vmax.f32 %v796, 0.0
    %v861 = vmax.f32 %v797, 0.0
    %v862 = vmax.f32 %v798, 0.0
    %v863 = vmax.f32 %v799, 0.0
    %v864 = vmax.f32 %v800, 0.0
    %v865 = vmax.f32 %v801, 0.0
    %v866 = vmax.f32 %v802, 0.0
    %v867 = vmax.f32 %v803, 0.0
    %v868 = vmax.f32 %v804, 0.0
    %v869 = vmax.f32 %v805, 0.0
    %v870 = vmax.f32 %v806, 0.0
    %v871 = vmax.f32 %v807, 0.0
    %v872 = vmax.f32 %v808, 0.0
    %v873 = vmax.f32 %v809, 0.0
    %v874 = vmax.f32 %v810, 0.0
    %v875 = vmax.f32 %v811, 0.0
    %v876 = vmax.f32 %v812, 0.0
    %v877 = vmax.f32 %v813, 0.0
    %v878 = vmax.f32 %v814, 0.0
    %v879 = vmax.f32 %v815, 0.0
    %v880 = vmax.f32 %v816, 0.0
    %v881 = vmax.f32 %v817, 0.0
    %v882 = vmax.f32 %v818, 0.0
    %v883 = vmax.f32 %v819, 0.0
    %v884 = vmax.f32 %v820, 0.0
    %v885 = vmax.f32 %v821, 0.0
    %v886 = vmax.f32 %v822, 0.0
    %v887 = vmax.f32 %v823, 0.0
    %v888 = vmax.f32 %v824, 0.0
    %v889 = vmax.f32 %v825, 0.0
    %v890 = vmax.f32 %v826, 0.0
    %v891 = vmax.f32 %v827, 0.0
    %v892 = vmax.f32 %v828, 0.0
    %v893 = vmax.f32 %v829, 0.0
    %v894 = vmax.f32 %v830, 0.0
    %v895 = vmax.f32 %v831, 0.0
    %v896 = vmax.f32 %v832, 0.0
    %v897 = vmax.f32 %v833, 0.0
    %v898 = vmax.f32 %v834, 0.0
    %v899 = vmax.f32 %v835, 0.0
    %v900 = vmax.f32 %v836, 0.0
    %v901 = vmax.f32 %v837, 0.0
    %v902 = vmax.f32 %v838, 0.0
    %v903 = vmax.f32 %v839, 0.0
    %v904 = vmax.f32 %v840, 0.0
    %v905 = vmax.f32 %v841, 0.0
    %v906 = vmax.f32 %v842, 0.0
    %v907 = vmax.f32 %v843, 0.0
    %v908 = vmax.f32 %v844, 0.0
    %v909 = vmax.f32 %v845, 0.0
    %v910 = vmax.f32 %v846, 0.0
    %v911 = vmax.f32 %v847, 0.0
    %v912 = vmax.f32 %v848, 0.0
    %v913 = vmax.f32 %v849, 0.0
    %v914 = vmax.f32 %v850, 0.0
    %v915 = vmax.f32 %v851, 0.0
    %v916 = vpack.c.bf16 %v854, %v852
    %v917 = vpack.c.bf16 %v855, %v853
    %v918 = vpack.c.bf16 %v858, %v856
    %v919 = vpack.c.bf16 %v859, %v857
    %v920 = vpack.c.bf16 %v862, %v860
    %v921 = vpack.c.bf16 %v863, %v861
    %v922 = vpack.c.bf16 %v866, %v864
    %v923 = vpack.c.bf16 %v867, %v865
    %v924 = vpack.c.bf16 %v870, %v868
    %v925 = vpack.c.bf16 %v871, %v869
    %v926 = vpack.c.bf16 %v874, %v872
    %v927 = vpack.c.bf16 %v875, %v873
    %v928 = vpack.c.bf16 %v878, %v876
    %v929 = vpack.c.bf16 %v879, %v877
    %v930 = vpack.c.bf16 %v882, %v880
    %v931 = vpack.c.bf16 %v883, %v881
    %v932 = vpack.c.bf16 %v886, %v884
    %v933 = vpack.c.bf16 %v887, %v885
    %v934 = vpack.c.bf16 %v890, %v888
    %v935 = vpack.c.bf16 %v891, %v889
    %v936 = vpack.c.bf16 %v894, %v892
    %v937 = vpack.c.bf16 %v895, %v893
    %v938 = vpack.c.bf16 %v898, %v896
    %v939 = vpack.c.bf16 %v899, %v897
    %v940 = vpack.c.bf16 %v902, %v900
    %v941 = vpack.c.bf16 %v903, %v901
    %v942 = vpack.c.bf16 %v906, %v904
    %v943 = vpack.c.bf16 %v907, %v905
    %v944 = vpack.c.bf16 %v910, %v908
    %v945 = vpack.c.bf16 %v911, %v909
    %v946 = vpack.c.bf16 %v914, %v912
    %v947 = vpack.c.bf16 %v915, %v913
    %v948 = vld [vmem:[#allocation2] sm:$0xff]
    %v949 = vld [vmem:[#allocation2 + $0x8] sm:$0xff]
    %v950 = vld [vmem:[#allocation2 + $0x10] sm:$0xff]
    %v951 = vld [vmem:[#allocation2 + $0x18] sm:$0xff]
    %v952 = vld [vmem:[#allocation2 + $0x20] sm:$0xff]
    %v953 = vld [vmem:[#allocation2 + $0x28] sm:$0xff]
    %v954 = vld [vmem:[#allocation2 + $0x30] sm:$0xff]
    %v955 = vld [vmem:[#allocation2 + $0x38] sm:$0xff]
    %v956 = vld [vmem:[#allocation2 + $0x40] sm:$0xff]
    %v957 = vld [vmem:[#allocation2 + $0x48] sm:$0xff]
    %v958 = vld [vmem:[#allocation2 + $0x50] sm:$0xff]
    %v959 = vld [vmem:[#allocation2 + $0x58] sm:$0xff]
    %v960 = vld [vmem:[#allocation2 + $0x60] sm:$0xff]
    %v961 = vld [vmem:[#allocation2 + $0x68] sm:$0xff]
    %v962 = vld [vmem:[#allocation2 + $0x70] sm:$0xff]
    %v963 = vld [vmem:[#allocation2 + $0x78] sm:$0xff]
    %v964 = vld [vmem:[#allocation2 + $0x80] sm:$0xff]
    %v965 = vld [vmem:[#allocation2 + $0x88] sm:$0xff]
    %v966 = vld [vmem:[#allocation2 + $0x90] sm:$0xff]
    %v967 = vld [vmem:[#allocation2 + $0x98] sm:$0xff]
    %v968 = vld [vmem:[#allocation2 + $0xa0] sm:$0xff]
    %v969 = vld [vmem:[#allocation2 + $0xa8] sm:$0xff]
    %v970 = vld [vmem:[#allocation2 + $0xb0] sm:$0xff]
    %v971 = vld [vmem:[#allocation2 + $0xb8] sm:$0xff]
    %v972 = vld [vmem:[#allocation2 + $0xc0] sm:$0xff]
    %v973 = vld [vmem:[#allocation2 + $0xc8] sm:$0xff]
    %v974 = vld [vmem:[#allocation2 + $0xd0] sm:$0xff]
    %v975 = vld [vmem:[#allocation2 + $0xd8] sm:$0xff]
    %v976 = vld [vmem:[#allocation2 + $0xe0] sm:$0xff]
    %v977 = vld [vmem:[#allocation2 + $0xe8] sm:$0xff]
    %v978 = vld [vmem:[#allocation2 + $0xf0] sm:$0xff]
    %v979 = vld [vmem:[#allocation2 + $0xf8] sm:$0xff]
    %v1012 = vunpack.c.l.b16 %v948
    %v1013 = vunpack.c.h.b16 %v948
    %v1014 = vunpack.c.l.b16 %v949
    %v1015 = vunpack.c.h.b16 %v949
    %v1016 = vunpack.c.l.b16 %v950
    %v1017 = vunpack.c.h.b16 %v950
    %v1018 = vunpack.c.l.b16 %v951
    %v1019 = vunpack.c.h.b16 %v951
    %v1020 = vunpack.c.l.b16 %v952
    %v1021 = vunpack.c.h.b16 %v952
    %v1022 = vunpack.c.l.b16 %v953
    %v1023 = vunpack.c.h.b16 %v953
    %v1024 = vunpack.c.l.b16 %v954
    %v1025 = vunpack.c.h.b16 %v954
    %v1026 = vunpack.c.l.b16 %v955
    %v1027 = vunpack.c.h.b16 %v955
    %v1028 = vunpack.c.l.b16 %v956
    %v1029 = vunpack.c.h.b16 %v956
    %v1030 = vunpack.c.l.b16 %v957
    %v1031 = vunpack.c.h.b16 %v957
    %v1032 = vunpack.c.l.b16 %v958
    %v1033 = vunpack.c.h.b16 %v958
    %v1034 = vunpack.c.l.b16 %v959
    %v1035 = vunpack.c.h.b16 %v959
    %v1036 = vunpack.c.l.b16 %v960
    %v1037 = vunpack.c.h.b16 %v960
    %v1038 = vunpack.c.l.b16 %v961
    %v1039 = vunpack.c.h.b16 %v961
    %v1040 = vunpack.c.l.b16 %v962
    %v1041 = vunpack.c.h.b16 %v962
    %v1042 = vunpack.c.l.b16 %v963
    %v1043 = vunpack.c.h.b16 %v963
    %v1044 = vunpack.c.l.b16 %v964
    %v1045 = vunpack.c.h.b16 %v964
    %v1046 = vunpack.c.l.b16 %v965
    %v1047 = vunpack.c.h.b16 %v965
    %v1048 = vunpack.c.l.b16 %v966
    %v1049 = vunpack.c.h.b16 %v966
    %v1050 = vunpack.c.l.b16 %v967
    %v1051 = vunpack.c.h.b16 %v967
    %v1052 = vunpack.c.l.b16 %v968
    %v1053 = vunpack.c.h.b16 %v968
    %v1054 = vunpack.c.l.b16 %v969
    %v1055 = vunpack.c.h.b16 %v969
    %v1056 = vunpack.c.l.b16 %v970
    %v1057 = vunpack.c.h.b16 %v970
    %v1058 = vunpack.c.l.b16 %v971
    %v1059 = vunpack.c.h.b16 %v971
    %v1060 = vunpack.c.l.b16 %v972
    %v1061 = vunpack.c.h.b16 %v972
    %v1062 = vunpack.c.l.b16 %v973
    %v1063 = vunpack.c.h.b16 %v973
    %v1064 = vunpack.c.l.b16 %v974
    %v1065 = vunpack.c.h.b16 %v974
    %v1066 = vunpack.c.l.b16 %v975
    %v1067 = vunpack.c.h.b16 %v975
    %v1068 = vunpack.c.l.b16 %v976
    %v1069 = vunpack.c.h.b16 %v976
    %v1070 = vunpack.c.l.b16 %v977
    %v1071 = vunpack.c.h.b16 %v977
    %v1072 = vunpack.c.l.b16 %v978
    %v1073 = vunpack.c.h.b16 %v978
    %v1074 = vunpack.c.l.b16 %v979
    %v1075 = vunpack.c.h.b16 %v979
    %v1076 = vpack.c.b16 %v1014, %v1012
    %v1077 = vpack.c.b16 %v1015, %v1013
    %v1078 = vpack.c.b16 %v1018, %v1016
    %v1079 = vpack.c.b16 %v1019, %v1017
    %v1080 = vpack.c.b16 %v1022, %v1020
    %v1081 = vpack.c.b16 %v1023, %v1021
    %v1082 = vpack.c.b16 %v1026, %v1024
    %v1083 = vpack.c.b16 %v1027, %v1025
    %v1084 = vpack.c.b16 %v1030, %v1028
    %v1085 = vpack.c.b16 %v1031, %v1029
    %v1086 = vpack.c.b16 %v1034, %v1032
    %v1087 = vpack.c.b16 %v1035, %v1033
    %v1088 = vpack.c.b16 %v1038, %v1036
    %v1089 = vpack.c.b16 %v1039, %v1037
    %v1090 = vpack.c.b16 %v1042, %v1040
    %v1091 = vpack.c.b16 %v1043, %v1041
    %v1092 = vpack.c.b16 %v1046, %v1044
    %v1093 = vpack.c.b16 %v1047, %v1045
    %v1094 = vpack.c.b16 %v1050, %v1048
    %v1095 = vpack.c.b16 %v1051, %v1049
    %v1096 = vpack.c.b16 %v1054, %v1052
    %v1097 = vpack.c.b16 %v1055, %v1053
    %v1098 = vpack.c.b16 %v1058, %v1056
    %v1099 = vpack.c.b16 %v1059, %v1057
    %v1100 = vpack.c.b16 %v1062, %v1060
    %v1101 = vpack.c.b16 %v1063, %v1061
    %v1102 = vpack.c.b16 %v1066, %v1064
    %v1103 = vpack.c.b16 %v1067, %v1065
    %v1104 = vpack.c.b16 %v1070, %v1068
    %v1105 = vpack.c.b16 %v1071, %v1069
    %v1106 = vpack.c.b16 %v1074, %v1072
    %v1107 = vpack.c.b16 %v1075, %v1073
    %1140 = vmatprep.subr.bf16.mxu0 %v1077
    %1141 = vmatpush1.bf16.msra.mxu0 %v1076
    %1142 = vmatprep.subr.bf16.mxu0 %v1079
    %1143 = vmatpush1.bf16.msra.mxu0 %v1078
    %1144 = vmatprep.subr.bf16.mxu0 %v1081
    %1145 = vmatpush1.bf16.msra.mxu0 %v1080
    %1146 = vmatprep.subr.bf16.mxu0 %v1083
    %1147 = vmatpush1.bf16.msra.mxu0 %v1082
    %1148 = vmatprep.subr.bf16.mxu0 %v1085
    %1149 = vmatpush1.bf16.msra.mxu0 %v1084
    %1150 = vmatprep.subr.bf16.mxu0 %v1087
    %1151 = vmatpush1.bf16.msra.mxu0 %v1086
    %1152 = vmatprep.subr.bf16.mxu0 %v1089
    %1153 = vmatpush1.bf16.msra.mxu0 %v1088
    %1154 = vmatprep.subr.bf16.mxu0 %v1091
    %1155 = vmatpush1.bf16.msra.mxu0 %v1090
    %1156 = vmatprep.subr.bf16.mxu0 %v1093
    %1157 = vmatpush1.bf16.msra.mxu0 %v1092
    %1158 = vmatprep.subr.bf16.mxu0 %v1095
    %1159 = vmatpush1.bf16.msra.mxu0 %v1094
    %1160 = vmatprep.subr.bf16.mxu0 %v1097
    %1161 = vmatpush1.bf16.msra.mxu0 %v1096
    %1162 = vmatprep.subr.bf16.mxu0 %v1099
    %1163 = vmatpush1.bf16.msra.mxu0 %v1098
    %1164 = vmatprep.subr.bf16.mxu0 %v1101
    %1165 = vmatpush1.bf16.msra.mxu0 %v1100
    %1166 = vmatprep.subr.bf16.mxu0 %v1103
    %1167 = vmatpush1.bf16.msra.mxu0 %v1102
    %1168 = vmatprep.subr.bf16.mxu0 %v1105
    %1169 = vmatpush1.bf16.msra.mxu0 %v1104
    %1170 = vmatprep.subr.bf16.mxu0 %v1107
    %1171 = vmatpush1.bf16.msra.mxu0 %v1106
    %1172 = vmatprep.mubr.bf16.mxu0 %v917
    %1173 = vmatmul.mubr.bf16.gmra.mrb[0].mxu0 %v916
    %v1174 = vpop.f32.mrb[0].mxu0
    %v1175 = vadd.f32 0.0, %v1174
    %v1176 = vpop.f32.mrb[0].mxu0
    %v1177 = vadd.f32 0.0, %v1176
    %v1178 = vpop.f32.mrb[0].mxu0
    %v1179 = vadd.f32 0.0, %v1178
    %v1180 = vpop.f32.mrb[0].mxu0
    %v1181 = vadd.f32 0.0, %v1180
    %1182 = vmatprep.mubr.bf16.mxu0 %v919
    %1183 = vmatmul.mubr.bf16.gmra.mrb[0].mxu0 %v918
    %v1184 = vpop.f32.mrb[0].mxu0
    %v1185 = vadd.f32 0.0, %v1184
    %v1186 = vpop.f32.mrb[0].mxu0
    %v1187 = vadd.f32 0.0, %v1186
    %v1188 = vpop.f32.mrb[0].mxu0
    %v1189 = vadd.f32 0.0, %v1188
    %v1190 = vpop.f32.mrb[0].mxu0
    %v1191 = vadd.f32 0.0, %v1190
    %1192 = vmatprep.mubr.bf16.mxu0 %v921
    %1193 = vmatmul.mubr.bf16.gmra.mrb[0].mxu0 %v920
    %v1194 = vpop.f32.mrb[0].mxu0
    %v1195 = vadd.f32 0.0, %v1194
    %v1196 = vpop.f32.mrb[0].mxu0
    %v1197 = vadd.f32 0.0, %v1196
    %v1198 = vpop.f32.mrb[0].mxu0
    %v1199 = vadd.f32 0.0, %v1198
    %v1200 = vpop.f32.mrb[0].mxu0
    %v1201 = vadd.f32 0.0, %v1200
    %1202 = vmatprep.mubr.bf16.mxu0 %v923
    %1203 = vmatmul.mubr.bf16.gmra.mrb[0].mxu0 %v922
    %v1204 = vpop.f32.mrb[0].mxu0
    %v1205 = vadd.f32 0.0, %v1204
    %v1206 = vpop.f32.mrb[0].mxu0
    %v1207 = vadd.f32 0.0, %v1206
    %v1208 = vpop.f32.mrb[0].mxu0
    %v1209 = vadd.f32 0.0, %v1208
    %v1210 = vpop.f32.mrb[0].mxu0
    %v1211 = vadd.f32 0.0, %v1210
    %1212 = vmatprep.mubr.bf16.mxu0 %v925
    %1213 = vmatmul.mubr.bf16.gmra.mrb[0].mxu0 %v924
    %v1214 = vpop.f32.mrb[0].mxu0
    %v1215 = vadd.f32 0.0, %v1214
    %v1216 = vpop.f32.mrb[0].mxu0
    %v1217 = vadd.f32 0.0, %v1216
    %v1218 = vpop.f32.mrb[0].mxu0
    %v1219 = vadd.f32 0.0, %v1218
    %v1220 = vpop.f32.mrb[0].mxu0
    %v1221 = vadd.f32 0.0, %v1220
    %1222 = vmatprep.mubr.bf16.mxu0 %v927
    %1223 = vmatmul.mubr.bf16.gmra.mrb[0].mxu0 %v926
    %v1224 = vpop.f32.mrb[0].mxu0
    %v1225 = vadd.f32 0.0, %v1224
    %v1226 = vpop.f32.mrb[0].mxu0
    %v1227 = vadd.f32 0.0, %v1226
    %v1228 = vpop.f32.mrb[0].mxu0
    %v1229 = vadd.f32 0.0, %v1228
    %v1230 = vpop.f32.mrb[0].mxu0
    %v1231 = vadd.f32 0.0, %v1230
    %1232 = vmatprep.mubr.bf16.mxu0 %v929
    %1233 = vmatmul.mubr.bf16.gmra.mrb[0].mxu0 %v928
    %v1234 = vpop.f32.mrb[0].mxu0
    %v1235 = vadd.f32 0.0, %v1234
    %v1236 = vpop.f32.mrb[0].mxu0
    %v1237 = vadd.f32 0.0, %v1236
    %v1238 = vpop.f32.mrb[0].mxu0
    %v1239 = vadd.f32 0.0, %v1238
    %v1240 = vpop.f32.mrb[0].mxu0
    %v1241 = vadd.f32 0.0, %v1240
    %1242 = vmatprep.mubr.bf16.mxu0 %v931
    %1243 = vmatmul.mubr.bf16.gmra.mrb[0].mxu0 %v930
    %v1244 = vpop.f32.mrb[0].mxu0
    %v1245 = vadd.f32 0.0, %v1244
    %v1246 = vpop.f32.mrb[0].mxu0
    %v1247 = vadd.f32 0.0, %v1246
    %v1248 = vpop.f32.mrb[0].mxu0
    %v1249 = vadd.f32 0.0, %v1248
    %v1250 = vpop.f32.mrb[0].mxu0
    %v1251 = vadd.f32 0.0, %v1250
    %1252 = vmatprep.mubr.bf16.mxu0 %v933
    %1253 = vmatmul.mubr.bf16.gmra.mrb[0].mxu0 %v932
    %v1254 = vpop.f32.mrb[0].mxu0
    %v1255 = vadd.f32 0.0, %v1254
    %v1256 = vpop.f32.mrb[0].mxu0
    %v1257 = vadd.f32 0.0, %v1256
    %v1258 = vpop.f32.mrb[0].mxu0
    %v1259 = vadd.f32 0.0, %v1258
    %v1260 = vpop.f32.mrb[0].mxu0
    %v1261 = vadd.f32 0.0, %v1260
    %1262 = vmatprep.mubr.bf16.mxu0 %v935
    %1263 = vmatmul.mubr.bf16.gmra.mrb[0].mxu0 %v934
    %v1264 = vpop.f32.mrb[0].mxu0
    %v1265 = vadd.f32 0.0, %v1264
    %v1266 = vpop.f32.mrb[0].mxu0
    %v1267 = vadd.f32 0.0, %v1266
    %v1268 = vpop.f32.mrb[0].mxu0
    %v1269 = vadd.f32 0.0, %v1268
    %v1270 = vpop.f32.mrb[0].mxu0
    %v1271 = vadd.f32 0.0, %v1270
    %1272 = vmatprep.mubr.bf16.mxu0 %v937
    %1273 = vmatmul.mubr.bf16.gmra.mrb[0].mxu0 %v936
    %v1274 = vpop.f32.mrb[0].mxu0
    %v1275 = vadd.f32 0.0, %v1274
    %v1276 = vpop.f32.mrb[0].mxu0
    %v1277 = vadd.f32 0.0, %v1276
    %v1278 = vpop.f32.mrb[0].mxu0
    %v1279 = vadd.f32 0.0, %v1278
    %v1280 = vpop.f32.mrb[0].mxu0
    %v1281 = vadd.f32 0.0, %v1280
    %1282 = vmatprep.mubr.bf16.mxu0 %v939
    %1283 = vmatmul.mubr.bf16.gmra.mrb[0].mxu0 %v938
    %v1284 = vpop.f32.mrb[0].mxu0
    %v1285 = vadd.f32 0.0, %v1284
    %v1286 = vpop.f32.mrb[0].mxu0
    %v1287 = vadd.f32 0.0, %v1286
    %v1288 = vpop.f32.mrb[0].mxu0
    %v1289 = vadd.f32 0.0, %v1288
    %v1290 = vpop.f32.mrb[0].mxu0
    %v1291 = vadd.f32 0.0, %v1290
    %1292 = vmatprep.mubr.bf16.mxu0 %v941
    %1293 = vmatmul.mubr.bf16.gmra.mrb[0].mxu0 %v940
    %v1294 = vpop.f32.mrb[0].mxu0
    %v1295 = vadd.f32 0.0, %v1294
    %v1296 = vpop.f32.mrb[0].mxu0
    %v1297 = vadd.f32 0.0, %v1296
    %v1298 = vpop.f32.mrb[0].mxu0
    %v1299 = vadd.f32 0.0, %v1298
    %v1300 = vpop.f32.mrb[0].mxu0
    %v1301 = vadd.f32 0.0, %v1300
    %1302 = vmatprep.mubr.bf16.mxu0 %v943
    %1303 = vmatmul.mubr.bf16.gmra.mrb[0].mxu0 %v942
    %v1304 = vpop.f32.mrb[0].mxu0
    %v1305 = vadd.f32 0.0, %v1304
    %v1306 = vpop.f32.mrb[0].mxu0
    %v1307 = vadd.f32 0.0, %v1306
    %v1308 = vpop.f32.mrb[0].mxu0
    %v1309 = vadd.f32 0.0, %v1308
    %v1310 = vpop.f32.mrb[0].mxu0
    %v1311 = vadd.f32 0.0, %v1310
    %1312 = vmatprep.mubr.bf16.mxu0 %v945
    %1313 = vmatmul.mubr.bf16.gmra.mrb[0].mxu0 %v944
    %v1314 = vpop.f32.mrb[0].mxu0
    %v1315 = vadd.f32 0.0, %v1314
    %v1316 = vpop.f32.mrb[0].mxu0
    %v1317 = vadd.f32 0.0, %v1316
    %v1318 = vpop.f32.mrb[0].mxu0
    %v1319 = vadd.f32 0.0, %v1318
    %v1320 = vpop.f32.mrb[0].mxu0
    %v1321 = vadd.f32 0.0, %v1320
    %1322 = vmatprep.mubr.bf16.mxu0 %v947
    %1323 = vmatmul.mubr.bf16.gmra.mrb[0].mxu0 %v946
    %v1324 = vpop.f32.mrb[0].mxu0
    %v1325 = vadd.f32 0.0, %v1324
    %v1326 = vpop.f32.mrb[0].mxu0
    %v1327 = vadd.f32 0.0, %v1326
    %v1328 = vpop.f32.mrb[0].mxu0
    %v1329 = vadd.f32 0.0, %v1328
    %v1330 = vpop.f32.mrb[0].mxu0
    %v1331 = vadd.f32 0.0, %v1330
    %1332 = vdwg.mxu0
    %v1333 = vadd.f32 %v1175, %v1179
    %v1334 = vadd.f32 %v1333, %v1185
    %v1335 = vadd.f32 %v1334, %v1189
    %v1336 = vadd.f32 %v1335, %v1195
    %v1337 = vadd.f32 %v1336, %v1199
    %v1338 = vadd.f32 %v1337, %v1205
    %v1339 = vadd.f32 %v1338, %v1209
    %v1340 = vadd.f32 %v1339, %v1215
    %v1341 = vadd.f32 %v1340, %v1219
    %v1342 = vadd.f32 %v1341, %v1225
    %v1343 = vadd.f32 %v1342, %v1229
    %v1344 = vadd.f32 %v1343, %v1235
    %v1345 = vadd.f32 %v1344, %v1239
    %v1346 = vadd.f32 %v1345, %v1245
    %v1347 = vadd.f32 %v1346, %v1249
    %v1348 = vadd.f32 %v1347, %v1255
    %v1349 = vadd.f32 %v1348, %v1259
    %v1350 = vadd.f32 %v1349, %v1265
    %v1351 = vadd.f32 %v1350, %v1269
    %v1352 = vadd.f32 %v1351, %v1275
    %v1353 = vadd.f32 %v1352, %v1279
    %v1354 = vadd.f32 %v1353, %v1285
    %v1355 = vadd.f32 %v1354, %v1289
    %v1356 = vadd.f32 %v1355, %v1295
    %v1357 = vadd.f32 %v1356, %v1299
    %v1358 = vadd.f32 %v1357, %v1305
    %v1359 = vadd.f32 %v1358, %v1309
    %v1360 = vadd.f32 %v1359, %v1315
    %v1361 = vadd.f32 %v1360, %v1319
    %v1362 = vadd.f32 %v1361, %v1325
    %v1363 = vadd.f32 %v1362, %v1329
    %v1364 = vrot.slane %v1363, 4
    %v1365 = vadd.f32 %v1363, %v1364
    %v1366 = vrot.slane %v1365, 2
    %v1367 = vadd.f32 %v1365, %v1366
    %v1368 = vrot.slane %v1367, 1
    %v1369 = vadd.f32 %v1367, %v1368
    %v1370 = vadd.f32 %v1177, %v1181
    %v1371 = vadd.f32 %v1370, %v1187
    %v1372 = vadd.f32 %v1371, %v1191
    %v1373 = vadd.f32 %v1372, %v1197
    %v1374 = vadd.f32 %v1373, %v1201
    %v1375 = vadd.f32 %v1374, %v1207
    %v1376 = vadd.f32 %v1375, %v1211
    %v1377 = vadd.f32 %v1376, %v1217
    %v1378 = vadd.f32 %v1377, %v1221
    %v1379 = vadd.f32 %v1378, %v1227
    %v1380 = vadd.f32 %v1379, %v1231
    %v1381 = vadd.f32 %v1380, %v1237
    %v1382 = vadd.f32 %v1381, %v1241
    %v1383 = vadd.f32 %v1382, %v1247
    %v1384 = vadd.f32 %v1383, %v1251
    %v1385 = vadd.f32 %v1384, %v1257
    %v1386 = vadd.f32 %v1385, %v1261
    %v1387 = vadd.f32 %v1386, %v1267
    %v1388 = vadd.f32 %v1387, %v1271
    %v1389 = vadd.f32 %v1388, %v1277
    %v1390 = vadd.f32 %v1389, %v1281
    %v1391 = vadd.f32 %v1390, %v1287
    %v1392 = vadd.f32 %v1391, %v1291
    %v1393 = vadd.f32 %v1392, %v1297
    %v1394 = vadd.f32 %v1393, %v1301
    %v1395 = vadd.f32 %v1394, %v1307
    %v1396 = vadd.f32 %v1395, %v1311
    %v1397 = vadd.f32 %v1396, %v1317
    %v1398 = vadd.f32 %v1397, %v1321
    %v1399 = vadd.f32 %v1398, %v1327
    %v1400 = vadd.f32 %v1399, %v1331
    %v1401 = vrot.slane %v1400, 4
    %v1402 = vadd.f32 %v1400, %v1401
    %v1403 = vrot.slane %v1402, 2
    %v1404 = vadd.f32 %v1402, %v1403
    %v1405 = vrot.slane %v1404, 1
    %v1406 = vadd.f32 %v1404, %v1405
    %v1407 = vmul.f32 %v1369, %v520
    %v1408 = vmul.f32 %v1406, %v520
    %v1409 = vmul.f32 %v1175, %v1175
    %v1410 = vmul.f32 %v1177, %v1177
    %v1411 = vmul.f32 %v1179, %v1179
    %v1412 = vmul.f32 %v1181, %v1181
    %v1413 = vmul.f32 %v1185, %v1185
    %v1414 = vmul.f32 %v1187, %v1187
    %v1415 = vmul.f32 %v1189, %v1189
    %v1416 = vmul.f32 %v1191, %v1191
    %v1417 = vmul.f32 %v1195, %v1195
    %v1418 = vmul.f32 %v1197, %v1197
    %v1419 = vmul.f32 %v1199, %v1199
    %v1420 = vmul.f32 %v1201, %v1201
    %v1421 = vmul.f32 %v1205, %v1205
    %v1422 = vmul.f32 %v1207, %v1207
    %v1423 = vmul.f32 %v1209, %v1209
    %v1424 = vmul.f32 %v1211, %v1211
    %v1425 = vmul.f32 %v1215, %v1215
    %v1426 = vmul.f32 %v1217, %v1217
    %v1427 = vmul.f32 %v1219, %v1219
    %v1428 = vmul.f32 %v1221, %v1221
    %v1429 = vmul.f32 %v1225, %v1225
    %v1430 = vmul.f32 %v1227, %v1227
    %v1431 = vmul.f32 %v1229, %v1229
    %v1432 = vmul.f32 %v1231, %v1231
    %v1433 = vmul.f32 %v1235, %v1235
    %v1434 = vmul.f32 %v1237, %v1237
    %v1435 = vmul.f32 %v1239, %v1239
    %v1436 = vmul.f32 %v1241, %v1241
    %v1437 = vmul.f32 %v1245, %v1245
    %v1438 = vmul.f32 %v1247, %v1247
    %v1439 = vmul.f32 %v1249, %v1249
    %v1440 = vmul.f32 %v1251, %v1251
    %v1441 = vmul.f32 %v1255, %v1255
    %v1442 = vmul.f32 %v1257, %v1257
    %v1443 = vmul.f32 %v1259, %v1259
    %v1444 = vmul.f32 %v1261, %v1261
    %v1445 = vmul.f32 %v1265, %v1265
    %v1446 = vmul.f32 %v1267, %v1267
    %v1447 = vmul.f32 %v1269, %v1269
    %v1448 = vmul.f32 %v1271, %v1271
    %v1449 = vmul.f32 %v1275, %v1275
    %v1450 = vmul.f32 %v1277, %v1277
    %v1451 = vmul.f32 %v1279, %v1279
    %v1452 = vmul.f32 %v1281, %v1281
    %v1453 = vmul.f32 %v1285, %v1285
    %v1454 = vmul.f32 %v1287, %v1287
    %v1455 = vmul.f32 %v1289, %v1289
    %v1456 = vmul.f32 %v1291, %v1291
    %v1457 = vmul.f32 %v1295, %v1295
    %v1458 = vmul.f32 %v1297, %v1297
    %v1459 = vmul.f32 %v1299, %v1299
    %v1460 = vmul.f32 %v1301, %v1301
    %v1461 = vmul.f32 %v1305, %v1305
    %v1462 = vmul.f32 %v1307, %v1307
    %v1463 = vmul.f32 %v1309, %v1309
    %v1464 = vmul.f32 %v1311, %v1311
    %v1465 = vmul.f32 %v1315, %v1315
    %v1466 = vmul.f32 %v1317, %v1317
    %v1467 = vmul.f32 %v1319, %v1319
    %v1468 = vmul.f32 %v1321, %v1321
    %v1469 = vmul.f32 %v1325, %v1325
    %v1470 = vmul.f32 %v1327, %v1327
    %v1471 = vmul.f32 %v1329, %v1329
    %v1472 = vmul.f32 %v1331, %v1331
    %v1473 = vadd.f32 %v1409, %v1411
    %v1474 = vadd.f32 %v1473, %v1413
    %v1475 = vadd.f32 %v1474, %v1415
    %v1476 = vadd.f32 %v1475, %v1417
    %v1477 = vadd.f32 %v1476, %v1419
    %v1478 = vadd.f32 %v1477, %v1421
    %v1479 = vadd.f32 %v1478, %v1423
    %v1480 = vadd.f32 %v1479, %v1425
    %v1481 = vadd.f32 %v1480, %v1427
    %v1482 = vadd.f32 %v1481, %v1429
    %v1483 = vadd.f32 %v1482, %v1431
    %v1484 = vadd.f32 %v1483, %v1433
    %v1485 = vadd.f32 %v1484, %v1435
    %v1486 = vadd.f32 %v1485, %v1437
    %v1487 = vadd.f32 %v1486, %v1439
    %v1488 = vadd.f32 %v1487, %v1441
    %v1489 = vadd.f32 %v1488, %v1443
    %v1490 = vadd.f32 %v1489, %v1445
    %v1491 = vadd.f32 %v1490, %v1447
    %v1492 = vadd.f32 %v1491, %v1449
    %v1493 = vadd.f32 %v1492, %v1451
    %v1494 = vadd.f32 %v1493, %v1453
    %v1495 = vadd.f32 %v1494, %v1455
    %v1496 = vadd.f32 %v1495, %v1457
    %v1497 = vadd.f32 %v1496, %v1459
    %v1498 = vadd.f32 %v1497, %v1461
    %v1499 = vadd.f32 %v1498, %v1463
    %v1500 = vadd.f32 %v1499, %v1465
    %v1501 = vadd.f32 %v1500, %v1467
    %v1502 = vadd.f32 %v1501, %v1469
    %v1503 = vadd.f32 %v1502, %v1471
    %v1504 = vrot.slane %v1503, 4
    %v1505 = vadd.f32 %v1503, %v1504
    %v1506 = vrot.slane %v1505, 2
    %v1507 = vadd.f32 %v1505, %v1506
    %v1508 = vrot.slane %v1507, 1
    %v1509 = vadd.f32 %v1507, %v1508
    %v1510 = vadd.f32 %v1410, %v1412
    %v1511 = vadd.f32 %v1510, %v1414
    %v1512 = vadd.f32 %v1511, %v1416
    %v1513 = vadd.f32 %v1512, %v1418
    %v1514 = vadd.f32 %v1513, %v1420
    %v1515 = vadd.f32 %v1514, %v1422
    %v1516 = vadd.f32 %v1515, %v1424
    %v1517 = vadd.f32 %v1516, %v1426
    %v1518 = vadd.f32 %v1517, %v1428
    %v1519 = vadd.f32 %v1518, %v1430
    %v1520 = vadd.f32 %v1519, %v1432
    %v1521 = vadd.f32 %v1520, %v1434
    %v1522 = vadd.f32 %v1521, %v1436
    %v1523 = vadd.f32 %v1522, %v1438
    %v1524 = vadd.f32 %v1523, %v1440
    %v1525 = vadd.f32 %v1524, %v1442
    %v1526 = vadd.f32 %v1525, %v1444
    %v1527 = vadd.f32 %v1526, %v1446
    %v1528 = vadd.f32 %v1527, %v1448
    %v1529 = vadd.f32 %v1528, %v1450
    %v1530 = vadd.f32 %v1529, %v1452
    %v1531 = vadd.f32 %v1530, %v1454
    %v1532 = vadd.f32 %v1531, %v1456
    %v1533 = vadd.f32 %v1532, %v1458
    %v1534 = vadd.f32 %v1533, %v1460
    %v1535 = vadd.f32 %v1534, %v1462
    %v1536 = vadd.f32 %v1535, %v1464
    %v1537 = vadd.f32 %v1536, %v1466
    %v1538 = vadd.f32 %v1537, %v1468
    %v1539 = vadd.f32 %v1538, %v1470
    %v1540 = vadd.f32 %v1539, %v1472
    %v1541 = vrot.slane %v1540, 4
    %v1542 = vadd.f32 %v1540, %v1541
    %v1543 = vrot.slane %v1542, 2
    %v1544 = vadd.f32 %v1542, %v1543
    %v1545 = vrot.slane %v1544, 1
    %v1546 = vadd.f32 %v1544, %v1545
    %v1547 = vmul.f32 %v1509, %v520
    %v1548 = vmul.f32 %v1546, %v520
    %v1549 = vmul.f32 %v1407, %v1407
    %v1550 = vmul.f32 %v1408, %v1408
    %v1551 = vsub.f32 %v1547, %v1549
    %v1552 = vsub.f32 %v1548, %v1550
    %v1553 = vadd.f32 %v1551, 1e-05
    %v1554 = vadd.f32 %v1552, 1e-05
    %v1555 = vrsqrt.pop %v1553
    %v1556 = vrsqrt.pop %v1554
    %v1557 = vmul.f32 %v1555, %v675
    %v1558 = vmul.f32 %v1556, %v679
    %v1559 = vmul.f32 %v1407, %v1557
    %v1560 = vmul.f32 %v1408, %v1558
    %v1563 = vcombine.low %v1559, %v1560
    %v1565 = vunpack.c.l.s4 1966171168
    %v1566 = vunpack.c.0.s8 %v1565
    %v1567 = vlaneseq
    %v1568 = vshrl.u32 %v1567, 7
    %v1569 = vsub.s32 %v1566, %v1568
    %v1570 = vrot.slane %v1563, %v1569
    %v1572 = vunpack.c.l.s4 1966171168
    %v1573 = vunpack.c.0.s8 %v1572
    %v1574 = vlaneseq
    %v1575 = vshrl.u32 %v1574, 7
    %v1576 = vsub.s32 %v1573, %v1575
    %v1577 = vrot.slane %v1570, %v1576
    %v1579 = vsub.f32 %v43, %v1577
    %v1580 = vlaneseq
    %v1581 = vshrl.u32 %v1580, 7
    %v1582 = vsub.s32 0, %v1581
    %v1583 = vrot.slane %v1557, %v1582
    %v1584 = vlaneseq
    %v1585 = vshrl.u32 %v1584, 7
    %v1586 = vsub.s32 0, %v1585
    %v1587 = vrot.slane %v1558, %v1586
    %v1588 = vmul.f32 %v1175, %v1583
    %v1589 = vmul.f32 %v1177, %v1587
    %v1590 = vmul.f32 %v1179, %v1583
    %v1591 = vmul.f32 %v1181, %v1587
    %v1592 = vmul.f32 %v1185, %v1583
    %v1593 = vmul.f32 %v1187, %v1587
    %v1594 = vmul.f32 %v1189, %v1583
    %v1595 = vmul.f32 %v1191, %v1587
    %v1596 = vmul.f32 %v1195, %v1583
    %v1597 = vmul.f32 %v1197, %v1587
    %v1598 = vmul.f32 %v1199, %v1583
    %v1599 = vmul.f32 %v1201, %v1587
    %v1600 = vmul.f32 %v1205, %v1583
    %v1601 = vmul.f32 %v1207, %v1587
    %v1602 = vmul.f32 %v1209, %v1583
    %v1603 = vmul.f32 %v1211, %v1587
    %v1604 = vmul.f32 %v1215, %v1583
    %v1605 = vmul.f32 %v1217, %v1587
    %v1606 = vmul.f32 %v1219, %v1583
    %v1607 = vmul.f32 %v1221, %v1587
    %v1608 = vmul.f32 %v1225, %v1583
    %v1609 = vmul.f32 %v1227, %v1587
    %v1610 = vmul.f32 %v1229, %v1583
    %v1611 = vmul.f32 %v1231, %v1587
    %v1612 = vmul.f32 %v1235, %v1583
    %v1613 = vmul.f32 %v1237, %v1587
    %v1614 = vmul.f32 %v1239, %v1583
    %v1615 = vmul.f32 %v1241, %v1587
    %v1616 = vmul.f32 %v1245, %v1583
    %v1617 = vmul.f32 %v1247, %v1587
    %v1618 = vmul.f32 %v1249, %v1583
    %v1619 = vmul.f32 %v1251, %v1587
    %v1620 = vmul.f32 %v1255, %v1583
    %v1621 = vmul.f32 %v1257, %v1587
    %v1622 = vmul.f32 %v1259, %v1583
    %v1623 = vmul.f32 %v1261, %v1587
    %v1624 = vmul.f32 %v1265, %v1583
    %v1625 = vmul.f32 %v1267, %v1587
    %v1626 = vmul.f32 %v1269, %v1583
    %v1627 = vmul.f32 %v1271, %v1587
    %v1628 = vmul.f32 %v1275, %v1583
    %v1629 = vmul.f32 %v1277, %v1587
    %v1630 = vmul.f32 %v1279, %v1583
    %v1631 = vmul.f32 %v1281, %v1587
    %v1632 = vmul.f32 %v1285, %v1583
    %v1633 = vmul.f32 %v1287, %v1587
    %v1634 = vmul.f32 %v1289, %v1583
    %v1635 = vmul.f32 %v1291, %v1587
    %v1636 = vmul.f32 %v1295, %v1583
    %v1637 = vmul.f32 %v1297, %v1587
    %v1638 = vmul.f32 %v1299, %v1583
    %v1639 = vmul.f32 %v1301, %v1587
    %v1640 = vmul.f32 %v1305, %v1583
    %v1641 = vmul.f32 %v1307, %v1587
    %v1642 = vmul.f32 %v1309, %v1583
    %v1643 = vmul.f32 %v1311, %v1587
    %v1644 = vmul.f32 %v1315, %v1583
    %v1645 = vmul.f32 %v1317, %v1587
    %v1646 = vmul.f32 %v1319, %v1583
    %v1647 = vmul.f32 %v1321, %v1587
    %v1648 = vmul.f32 %v1325, %v1583
    %v1649 = vmul.f32 %v1327, %v1587
    %v1650 = vmul.f32 %v1329, %v1583
    %v1651 = vmul.f32 %v1331, %v1587
    %v1653 = vlaneseq
    %v1654 = vshrl.u32 %v1653, 7
    %v1655 = vsub.s32 0, %v1654
    %v1656 = vrot.slane %v1579, %v1655
    %v1657 = vlaneseq
    %v1658 = vshrl.u32 %v1657, 7
    %v1659 = vsub.s32 1, %v1658
    %v1660 = vrot.slane %v1579, %v1659
    %v1663 = vadd.f32 %v1588, %v1656
    %v1664 = vadd.f32 %v1589, %v1660
    %v1665 = vadd.f32 %v1590, %v1656
    %v1666 = vadd.f32 %v1591, %v1660
    %v1667 = vadd.f32 %v1592, %v1656
    %v1668 = vadd.f32 %v1593, %v1660
    %v1669 = vadd.f32 %v1594, %v1656
    %v1670 = vadd.f32 %v1595, %v1660
    %v1671 = vadd.f32 %v1596, %v1656
    %v1672 = vadd.f32 %v1597, %v1660
    %v1673 = vadd.f32 %v1598, %v1656
    %v1674 = vadd.f32 %v1599, %v1660
    %v1675 = vadd.f32 %v1600, %v1656
    %v1676 = vadd.f32 %v1601, %v1660
    %v1677 = vadd.f32 %v1602, %v1656
    %v1678 = vadd.f32 %v1603, %v1660
    %v1679 = vadd.f32 %v1604, %v1656
    %v1680 = vadd.f32 %v1605, %v1660
    %v1681 = vadd.f32 %v1606, %v1656
    %v1682 = vadd.f32 %v1607, %v1660
    %v1683 = vadd.f32 %v1608, %v1656
    %v1684 = vadd.f32 %v1609, %v1660
    %v1685 = vadd.f32 %v1610, %v1656
    %v1686 = vadd.f32 %v1611, %v1660
    %v1687 = vadd.f32 %v1612, %v1656
    %v1688 = vadd.f32 %v1613, %v1660
    %v1689 = vadd.f32 %v1614, %v1656
    %v1690 = vadd.f32 %v1615, %v1660
    %v1691 = vadd.f32 %v1616, %v1656
    %v1692 = vadd.f32 %v1617, %v1660
    %v1693 = vadd.f32 %v1618, %v1656
    %v1694 = vadd.f32 %v1619, %v1660
    %v1695 = vadd.f32 %v1620, %v1656
    %v1696 = vadd.f32 %v1621, %v1660
    %v1697 = vadd.f32 %v1622, %v1656
    %v1698 = vadd.f32 %v1623, %v1660
    %v1699 = vadd.f32 %v1624, %v1656
    %v1700 = vadd.f32 %v1625, %v1660
    %v1701 = vadd.f32 %v1626, %v1656
    %v1702 = vadd.f32 %v1627, %v1660
    %v1703 = vadd.f32 %v1628, %v1656
    %v1704 = vadd.f32 %v1629, %v1660
    %v1705 = vadd.f32 %v1630, %v1656
    %v1706 = vadd.f32 %v1631, %v1660
    %v1707 = vadd.f32 %v1632, %v1656
    %v1708 = vadd.f32 %v1633, %v1660
    %v1709 = vadd.f32 %v1634, %v1656
    %v1710 = vadd.f32 %v1635, %v1660
    %v1711 = vadd.f32 %v1636, %v1656
    %v1712 = vadd.f32 %v1637, %v1660
    %v1713 = vadd.f32 %v1638, %v1656
    %v1714 = vadd.f32 %v1639, %v1660
    %v1715 = vadd.f32 %v1640, %v1656
    %v1716 = vadd.f32 %v1641, %v1660
    %v1717 = vadd.f32 %v1642, %v1656
    %v1718 = vadd.f32 %v1643, %v1660
    %v1719 = vadd.f32 %v1644, %v1656
    %v1720 = vadd.f32 %v1645, %v1660
    %v1721 = vadd.f32 %v1646, %v1656
    %v1722 = vadd.f32 %v1647, %v1660
    %v1723 = vadd.f32 %v1648, %v1656
    %v1724 = vadd.f32 %v1649, %v1660
    %v1725 = vadd.f32 %v1650, %v1656
    %v1726 = vadd.f32 %v1651, %v1660
    %v1727 = vmax.f32 %v1663, 0.0
    %v1728 = vmax.f32 %v1664, 0.0
    %v1729 = vmax.f32 %v1665, 0.0
    %v1730 = vmax.f32 %v1666, 0.0
    %v1731 = vmax.f32 %v1667, 0.0
    %v1732 = vmax.f32 %v1668, 0.0
    %v1733 = vmax.f32 %v1669, 0.0
    %v1734 = vmax.f32 %v1670, 0.0
    %v1735 = vmax.f32 %v1671, 0.0
    %v1736 = vmax.f32 %v1672, 0.0
    %v1737 = vmax.f32 %v1673, 0.0
    %v1738 = vmax.f32 %v1674, 0.0
    %v1739 = vmax.f32 %v1675, 0.0
    %v1740 = vmax.f32 %v1676, 0.0
    %v1741 = vmax.f32 %v1677, 0.0
    %v1742 = vmax.f32 %v1678, 0.0
    %v1743 = vmax.f32 %v1679, 0.0
    %v1744 = vmax.f32 %v1680, 0.0
    %v1745 = vmax.f32 %v1681, 0.0
    %v1746 = vmax.f32 %v1682, 0.0
    %v1747 = vmax.f32 %v1683, 0.0
    %v1748 = vmax.f32 %v1684, 0.0
    %v1749 = vmax.f32 %v1685, 0.0
    %v1750 = vmax.f32 %v1686, 0.0
    %v1751 = vmax.f32 %v1687, 0.0
    %v1752 = vmax.f32 %v1688, 0.0
    %v1753 = vmax.f32 %v1689, 0.0
    %v1754 = vmax.f32 %v1690, 0.0
    %v1755 = vmax.f32 %v1691, 0.0
    %v1756 = vmax.f32 %v1692, 0.0
    %v1757 = vmax.f32 %v1693, 0.0
    %v1758 = vmax.f32 %v1694, 0.0
    %v1759 = vmax.f32 %v1695, 0.0
    %v1760 = vmax.f32 %v1696, 0.0
    %v1761 = vmax.f32 %v1697, 0.0
    %v1762 = vmax.f32 %v1698, 0.0
    %v1763 = vmax.f32 %v1699, 0.0
    %v1764 = vmax.f32 %v1700, 0.0
    %v1765 = vmax.f32 %v1701, 0.0
    %v1766 = vmax.f32 %v1702, 0.0
    %v1767 = vmax.f32 %v1703, 0.0
    %v1768 = vmax.f32 %v1704, 0.0
    %v1769 = vmax.f32 %v1705, 0.0
    %v1770 = vmax.f32 %v1706, 0.0
    %v1771 = vmax.f32 %v1707, 0.0
    %v1772 = vmax.f32 %v1708, 0.0
    %v1773 = vmax.f32 %v1709, 0.0
    %v1774 = vmax.f32 %v1710, 0.0
    %v1775 = vmax.f32 %v1711, 0.0
    %v1776 = vmax.f32 %v1712, 0.0
    %v1777 = vmax.f32 %v1713, 0.0
    %v1778 = vmax.f32 %v1714, 0.0
    %v1779 = vmax.f32 %v1715, 0.0
    %v1780 = vmax.f32 %v1716, 0.0
    %v1781 = vmax.f32 %v1717, 0.0
    %v1782 = vmax.f32 %v1718, 0.0
    %v1783 = vmax.f32 %v1719, 0.0
    %v1784 = vmax.f32 %v1720, 0.0
    %v1785 = vmax.f32 %v1721, 0.0
    %v1786 = vmax.f32 %v1722, 0.0
    %v1787 = vmax.f32 %v1723, 0.0
    %v1788 = vmax.f32 %v1724, 0.0
    %v1789 = vmax.f32 %v1725, 0.0
    %v1790 = vmax.f32 %v1726, 0.0
    %v1791 = vpack.c.bf16 %v1729, %v1727
    %v1792 = vpack.c.bf16 %v1730, %v1728
    %v1793 = vpack.c.bf16 %v1733, %v1731
    %v1794 = vpack.c.bf16 %v1734, %v1732
    %v1795 = vpack.c.bf16 %v1737, %v1735
    %v1796 = vpack.c.bf16 %v1738, %v1736
    %v1797 = vpack.c.bf16 %v1741, %v1739
    %v1798 = vpack.c.bf16 %v1742, %v1740
    %v1799 = vpack.c.bf16 %v1745, %v1743
    %v1800 = vpack.c.bf16 %v1746, %v1744
    %v1801 = vpack.c.bf16 %v1749, %v1747
    %v1802 = vpack.c.bf16 %v1750, %v1748
    %v1803 = vpack.c.bf16 %v1753, %v1751
    %v1804 = vpack.c.bf16 %v1754, %v1752
    %v1805 = vpack.c.bf16 %v1757, %v1755
    %v1806 = vpack.c.bf16 %v1758, %v1756
    %v1807 = vpack.c.bf16 %v1761, %v1759
    %v1808 = vpack.c.bf16 %v1762, %v1760
    %v1809 = vpack.c.bf16 %v1765, %v1763
    %v1810 = vpack.c.bf16 %v1766, %v1764
    %v1811 = vpack.c.bf16 %v1769, %v1767
    %v1812 = vpack.c.bf16 %v1770, %v1768
    %v1813 = vpack.c.bf16 %v1773, %v1771
    %v1814 = vpack.c.bf16 %v1774, %v1772
    %v1815 = vpack.c.bf16 %v1777, %v1775
    %v1816 = vpack.c.bf16 %v1778, %v1776
    %v1817 = vpack.c.bf16 %v1781, %v1779
    %v1818 = vpack.c.bf16 %v1782, %v1780
    %v1819 = vpack.c.bf16 %v1785, %v1783
    %v1820 = vpack.c.bf16 %v1786, %v1784
    %v1821 = vpack.c.bf16 %v1789, %v1787
    %v1822 = vpack.c.bf16 %v1790, %v1788
    %v1823 = vld [vmem:[%s3] sm:$0xf]
    %v1824 = vld [vmem:[%s3 + $0x4] sm:$0xf]
    %v1825 = vld [vmem:[%s3 + $0x8] sm:$0xf]
    %v1826 = vld [vmem:[%s3 + $0xc] sm:$0xf]
    %v1827 = vld [vmem:[%s3 + $0x10] sm:$0xf]
    %v1828 = vld [vmem:[%s3 + $0x14] sm:$0xf]
    %v1829 = vld [vmem:[%s3 + $0x18] sm:$0xf]
    %v1830 = vld [vmem:[%s3 + $0x1c] sm:$0xf]
    %v1831 = vld [vmem:[%s3 + $0x20] sm:$0xf]
    %v1832 = vld [vmem:[%s3 + $0x24] sm:$0xf]
    %v1833 = vld [vmem:[%s3 + $0x28] sm:$0xf]
    %v1834 = vld [vmem:[%s3 + $0x2c] sm:$0xf]
    %v1835 = vld [vmem:[%s3 + $0x30] sm:$0xf]
    %v1836 = vld [vmem:[%s3 + $0x34] sm:$0xf]
    %v1837 = vld [vmem:[%s3 + $0x38] sm:$0xf]
    %v1838 = vld [vmem:[%s3 + $0x3c] sm:$0xf]
    %v1839 = vld [vmem:[%s3 + $0x40] sm:$0xf]
    %v1840 = vld [vmem:[%s3 + $0x44] sm:$0xf]
    %v1841 = vld [vmem:[%s3 + $0x48] sm:$0xf]
    %v1842 = vld [vmem:[%s3 + $0x4c] sm:$0xf]
    %v1843 = vld [vmem:[%s3 + $0x50] sm:$0xf]
    %v1844 = vld [vmem:[%s3 + $0x54] sm:$0xf]
    %v1845 = vld [vmem:[%s3 + $0x58] sm:$0xf]
    %v1846 = vld [vmem:[%s3 + $0x5c] sm:$0xf]
    %v1847 = vld [vmem:[%s3 + $0x60] sm:$0xf]
    %v1848 = vld [vmem:[%s3 + $0x64] sm:$0xf]
    %v1849 = vld [vmem:[%s3 + $0x68] sm:$0xf]
    %v1850 = vld [vmem:[%s3 + $0x6c] sm:$0xf]
    %v1851 = vld [vmem:[%s3 + $0x70] sm:$0xf]
    %v1852 = vld [vmem:[%s3 + $0x74] sm:$0xf]
    %v1853 = vld [vmem:[%s3 + $0x78] sm:$0xf]
    %v1854 = vld [vmem:[%s3 + $0x7c] sm:$0xf]
    %v1855 = vld [vmem:[%s4] sm:$0x1]
    %v1857 = vlaneseq
    %v1858 = vshrl.u32 %v1857, 7
    %v1859 = vsub.s32 0, %v1858
    %v1860 = vrot.slane %v1855, %v1859
    %v1894 = vunpack.c.l.b16 %v1823
    %v1895 = vunpack.c.l.b16 %v1824
    %v1896 = vunpack.c.l.b16 %v1825
    %v1897 = vunpack.c.l.b16 %v1826
    %v1898 = vunpack.c.l.b16 %v1827
    %v1899 = vunpack.c.l.b16 %v1828
    %v1900 = vunpack.c.l.b16 %v1829
    %v1901 = vunpack.c.l.b16 %v1830
    %v1902 = vunpack.c.l.b16 %v1831
    %v1903 = vunpack.c.l.b16 %v1832
    %v1904 = vunpack.c.l.b16 %v1833
    %v1905 = vunpack.c.l.b16 %v1834
    %v1906 = vunpack.c.l.b16 %v1835
    %v1907 = vunpack.c.l.b16 %v1836
    %v1908 = vunpack.c.l.b16 %v1837
    %v1909 = vunpack.c.l.b16 %v1838
    %v1910 = vunpack.c.l.b16 %v1839
    %v1911 = vunpack.c.l.b16 %v1840
    %v1912 = vunpack.c.l.b16 %v1841
    %v1913 = vunpack.c.l.b16 %v1842
    %v1914 = vunpack.c.l.b16 %v1843
    %v1915 = vunpack.c.l.b16 %v1844
    %v1916 = vunpack.c.l.b16 %v1845
    %v1917 = vunpack.c.l.b16 %v1846
    %v1918 = vunpack.c.l.b16 %v1847
    %v1919 = vunpack.c.l.b16 %v1848
    %v1920 = vunpack.c.l.b16 %v1849
    %v1921 = vunpack.c.l.b16 %v1850
    %v1922 = vunpack.c.l.b16 %v1851
    %v1923 = vunpack.c.l.b16 %v1852
    %v1924 = vunpack.c.l.b16 %v1853
    %v1925 = vunpack.c.l.b16 %v1854
    %v1926 = vpack.c.b16 %v1895, %v1894
    %v1927 = vpack.c.b16 %v1897, %v1896
    %v1928 = vpack.c.b16 %v1899, %v1898
    %v1929 = vpack.c.b16 %v1901, %v1900
    %v1930 = vpack.c.b16 %v1903, %v1902
    %v1931 = vpack.c.b16 %v1905, %v1904
    %v1932 = vpack.c.b16 %v1907, %v1906
    %v1933 = vpack.c.b16 %v1909, %v1908
    %v1934 = vpack.c.b16 %v1911, %v1910
    %v1935 = vpack.c.b16 %v1913, %v1912
    %v1936 = vpack.c.b16 %v1915, %v1914
    %v1937 = vpack.c.b16 %v1917, %v1916
    %v1938 = vpack.c.b16 %v1919, %v1918
    %v1939 = vpack.c.b16 %v1921, %v1920
    %v1940 = vpack.c.b16 %v1923, %v1922
    %v1941 = vpack.c.b16 %v1925, %v1924
    %1958 = vmatprep.subr.bf16.mxu0 0
    %1959 = vmatpush1.bf16.msra.mxu0 %v1926
    %1960 = vmatprep.subr.bf16.mxu0 0
    %1961 = vmatpush1.bf16.msra.mxu0 %v1927
    %1962 = vmatprep.subr.bf16.mxu0 0
    %1963 = vmatpush1.bf16.msra.mxu0 %v1928
    %1964 = vmatprep.subr.bf16.mxu0 0
    %1965 = vmatpush1.bf16.msra.mxu0 %v1929
    %1966 = vmatprep.subr.bf16.mxu0 0
    %1967 = vmatpush1.bf16.msra.mxu0 %v1930
    %1968 = vmatprep.subr.bf16.mxu0 0
    %1969 = vmatpush1.bf16.msra.mxu0 %v1931
    %1970 = vmatprep.subr.bf16.mxu0 0
    %1971 = vmatpush1.bf16.msra.mxu0 %v1932
    %1972 = vmatprep.subr.bf16.mxu0 0
    %1973 = vmatpush1.bf16.msra.mxu0 %v1933
    %1974 = vmatprep.subr.bf16.mxu0 0
    %1975 = vmatpush1.bf16.msra.mxu0 %v1934
    %1976 = vmatprep.subr.bf16.mxu0 0
    %1977 = vmatpush1.bf16.msra.mxu0 %v1935
    %1978 = vmatprep.subr.bf16.mxu0 0
    %1979 = vmatpush1.bf16.msra.mxu0 %v1936
    %1980 = vmatprep.subr.bf16.mxu0 0
    %1981 = vmatpush1.bf16.msra.mxu0 %v1937
    %1982 = vmatprep.subr.bf16.mxu0 0
    %1983 = vmatpush1.bf16.msra.mxu0 %v1938
    %1984 = vmatprep.subr.bf16.mxu0 0
    %1985 = vmatpush1.bf16.msra.mxu0 %v1939
    %1986 = vmatprep.subr.bf16.mxu0 0
    %1987 = vmatpush1.bf16.msra.mxu0 %v1940
    %1988 = vmatprep.subr.bf16.mxu0 0
    %1989 = vmatpush1.bf16.msra.mxu0 %v1941
    %1990 = vmatprep.mubr.bf16.mxu0 %v1792
    %1991 = vmatmul.mubr.bf16.gmra.mrb[0].mxu0 %v1791
    %v1992 = vpop.f32.mrb[0].mxu0
    %v1993 = vadd.f32 %v1860, %v1992
    %v1994 = vpop.f32.mrb[0].mxu0
    %v1995 = vpop.f32.mrb[0].mxu0
    %v1996 = vadd.f32 %v1860, %v1995
    %v1997 = vpop.f32.mrb[0].mxu0
    %1998 = vmatprep.mubr.bf16.mxu0 %v1794
    %1999 = vmatmul.mubr.bf16.gmra.mrb[0].mxu0 %v1793
    %v2000 = vpop.f32.mrb[0].mxu0
    %v2001 = vadd.f32 %v1860, %v2000
    %v2002 = vpop.f32.mrb[0].mxu0
    %v2003 = vpop.f32.mrb[0].mxu0
    %v2004 = vadd.f32 %v1860, %v2003
    %v2005 = vpop.f32.mrb[0].mxu0
    %2006 = vmatprep.mubr.bf16.mxu0 %v1796
    %2007 = vmatmul.mubr.bf16.gmra.mrb[0].mxu0 %v1795
    %v2008 = vpop.f32.mrb[0].mxu0
    %v2009 = vadd.f32 %v1860, %v2008
    %v2010 = vpop.f32.mrb[0].mxu0
    %v2011 = vpop.f32.mrb[0].mxu0
    %v2012 = vadd.f32 %v1860, %v2011
    %v2013 = vpop.f32.mrb[0].mxu0
    %2014 = vmatprep.mubr.bf16.mxu0 %v1798
    %2015 = vmatmul.mubr.bf16.gmra.mrb[0].mxu0 %v1797
    %v2016 = vpop.f32.mrb[0].mxu0
    %v2017 = vadd.f32 %v1860, %v2016
    %v2018 = vpop.f32.mrb[0].mxu0
    %v2019 = vpop.f32.mrb[0].mxu0
    %v2020 = vadd.f32 %v1860, %v2019
    %v2021 = vpop.f32.mrb[0].mxu0
    %2022 = vmatprep.mubr.bf16.mxu0 %v1800
    %2023 = vmatmul.mubr.bf16.gmra.mrb[0].mxu0 %v1799
    %v2024 = vpop.f32.mrb[0].mxu0
    %v2025 = vadd.f32 %v1860, %v2024
    %v2026 = vpop.f32.mrb[0].mxu0
    %v2027 = vpop.f32.mrb[0].mxu0
    %v2028 = vadd.f32 %v1860, %v2027
    %v2029 = vpop.f32.mrb[0].mxu0
    %2030 = vmatprep.mubr.bf16.mxu0 %v1802
    %2031 = vmatmul.mubr.bf16.gmra.mrb[0].mxu0 %v1801
    %v2032 = vpop.f32.mrb[0].mxu0
    %v2033 = vadd.f32 %v1860, %v2032
    %v2034 = vpop.f32.mrb[0].mxu0
    %v2035 = vpop.f32.mrb[0].mxu0
    %v2036 = vadd.f32 %v1860, %v2035
    %v2037 = vpop.f32.mrb[0].mxu0
    %2038 = vmatprep.mubr.bf16.mxu0 %v1804
    %2039 = vmatmul.mubr.bf16.gmra.mrb[0].mxu0 %v1803
    %v2040 = vpop.f32.mrb[0].mxu0
    %v2041 = vadd.f32 %v1860, %v2040
    %v2042 = vpop.f32.mrb[0].mxu0
    %v2043 = vpop.f32.mrb[0].mxu0
    %v2044 = vadd.f32 %v1860, %v2043
    %v2045 = vpop.f32.mrb[0].mxu0
    %2046 = vmatprep.mubr.bf16.mxu0 %v1806
    %2047 = vmatmul.mubr.bf16.gmra.mrb[0].mxu0 %v1805
    %v2048 = vpop.f32.mrb[0].mxu0
    %v2049 = vadd.f32 %v1860, %v2048
    %v2050 = vpop.f32.mrb[0].mxu0
    %v2051 = vpop.f32.mrb[0].mxu0
    %v2052 = vadd.f32 %v1860, %v2051
    %v2053 = vpop.f32.mrb[0].mxu0
    %2054 = vmatprep.mubr.bf16.mxu0 %v1808
    %2055 = vmatmul.mubr.bf16.gmra.mrb[0].mxu0 %v1807
    %v2056 = vpop.f32.mrb[0].mxu0
    %v2057 = vadd.f32 %v1860, %v2056
    %v2058 = vpop.f32.mrb[0].mxu0
    %v2059 = vpop.f32.mrb[0].mxu0
    %v2060 = vadd.f32 %v1860, %v2059
    %v2061 = vpop.f32.mrb[0].mxu0
    %2062 = vmatprep.mubr.bf16.mxu0 %v1810
    %2063 = vmatmul.mubr.bf16.gmra.mrb[0].mxu0 %v1809
    %v2064 = vpop.f32.mrb[0].mxu0
    %v2065 = vadd.f32 %v1860, %v2064
    %v2066 = vpop.f32.mrb[0].mxu0
    %v2067 = vpop.f32.mrb[0].mxu0
    %v2068 = vadd.f32 %v1860, %v2067
    %v2069 = vpop.f32.mrb[0].mxu0
    %2070 = vmatprep.mubr.bf16.mxu0 %v1812
    %2071 = vmatmul.mubr.bf16.gmra.mrb[0].mxu0 %v1811
    %v2072 = vpop.f32.mrb[0].mxu0
    %v2073 = vadd.f32 %v1860, %v2072
    %v2074 = vpop.f32.mrb[0].mxu0
    %v2075 = vpop.f32.mrb[0].mxu0
    %v2076 = vadd.f32 %v1860, %v2075
    %v2077 = vpop.f32.mrb[0].mxu0
    %2078 = vmatprep.mubr.bf16.mxu0 %v1814
    %2079 = vmatmul.mubr.bf16.gmra.mrb[0].mxu0 %v1813
    %v2080 = vpop.f32.mrb[0].mxu0
    %v2081 = vadd.f32 %v1860, %v2080
    %v2082 = vpop.f32.mrb[0].mxu0
    %v2083 = vpop.f32.mrb[0].mxu0
    %v2084 = vadd.f32 %v1860, %v2083
    %v2085 = vpop.f32.mrb[0].mxu0
    %2086 = vmatprep.mubr.bf16.mxu0 %v1816
    %2087 = vmatmul.mubr.bf16.gmra.mrb[0].mxu0 %v1815
    %v2088 = vpop.f32.mrb[0].mxu0
    %v2089 = vadd.f32 %v1860, %v2088
    %v2090 = vpop.f32.mrb[0].mxu0
    %v2091 = vpop.f32.mrb[0].mxu0
    %v2092 = vadd.f32 %v1860, %v2091
    %v2093 = vpop.f32.mrb[0].mxu0
    %2094 = vmatprep.mubr.bf16.mxu0 %v1818
    %2095 = vmatmul.mubr.bf16.gmra.mrb[0].mxu0 %v1817
    %v2096 = vpop.f32.mrb[0].mxu0
    %v2097 = vadd.f32 %v1860, %v2096
    %v2098 = vpop.f32.mrb[0].mxu0
    %v2099 = vpop.f32.mrb[0].mxu0
    %v2100 = vadd.f32 %v1860, %v2099
    %v2101 = vpop.f32.mrb[0].mxu0
    %2102 = vmatprep.mubr.bf16.mxu0 %v1820
    %2103 = vmatmul.mubr.bf16.gmra.mrb[0].mxu0 %v1819
    %v2104 = vpop.f32.mrb[0].mxu0
    %v2105 = vadd.f32 %v1860, %v2104
    %v2106 = vpop.f32.mrb[0].mxu0
    %v2107 = vpop.f32.mrb[0].mxu0
    %v2108 = vadd.f32 %v1860, %v2107
    %v2109 = vpop.f32.mrb[0].mxu0
    %2110 = vmatprep.mubr.bf16.mxu0 %v1822
    %2111 = vmatmul.mubr.bf16.gmra.mrb[0].mxu0 %v1821
    %v2112 = vpop.f32.mrb[0].mxu0
    %v2113 = vadd.f32 %v1860, %v2112
    %v2114 = vpop.f32.mrb[0].mxu0
    %v2115 = vpop.f32.mrb[0].mxu0
    %v2116 = vadd.f32 %v1860, %v2115
    %v2117 = vpop.f32.mrb[0].mxu0
    %2118 = vdwg.mxu0
    %2119 = vst [vmem:[#allocation5] sm:$0xff] %v1993
    %2120 = vst [vmem:[#allocation5 + $0x8] sm:$0xff] %v1996
    %2121 = vst [vmem:[#allocation5 + $0x10] sm:$0xff] %v2001
    %2122 = vst [vmem:[#allocation5 + $0x18] sm:$0xff] %v2004
    %2123 = vst [vmem:[#allocation5 + $0x20] sm:$0xff] %v2009
    %2124 = vst [vmem:[#allocation5 + $0x28] sm:$0xff] %v2012
    %2125 = vst [vmem:[#allocation5 + $0x30] sm:$0xff] %v2017
    %2126 = vst [vmem:[#allocation5 + $0x38] sm:$0xff] %v2020
    %2127 = vst [vmem:[#allocation5 + $0x40] sm:$0xff] %v2025
    %2128 = vst [vmem:[#allocation5 + $0x48] sm:$0xff] %v2028
    %2129 = vst [vmem:[#allocation5 + $0x50] sm:$0xff] %v2033
    %2130 = vst [vmem:[#allocation5 + $0x58] sm:$0xff] %v2036
    %2131 = vst [vmem:[#allocation5 + $0x60] sm:$0xff] %v2041
    %2132 = vst [vmem:[#allocation5 + $0x68] sm:$0xff] %v2044
    %2133 = vst [vmem:[#allocation5 + $0x70] sm:$0xff] %v2049
    %2134 = vst [vmem:[#allocation5 + $0x78] sm:$0xff] %v2052
    %2135 = vst [vmem:[#allocation5 + $0x80] sm:$0xff] %v2057
    %2136 = vst [vmem:[#allocation5 + $0x88] sm:$0xff] %v2060
    %2137 = vst [vmem:[#allocation5 + $0x90] sm:$0xff] %v2065
    %2138 = vst [vmem:[#allocation5 + $0x98] sm:$0xff] %v2068
    %2139 = vst [vmem:[#allocation5 + $0xa0] sm:$0xff] %v2073
    %2140 = vst [vmem:[#allocation5 + $0xa8] sm:$0xff] %v2076
    %2141 = vst [vmem:[#allocation5 + $0xb0] sm:$0xff] %v2081
    %2142 = vst [vmem:[#allocation5 + $0xb8] sm:$0xff] %v2084
    %2143 = vst [vmem:[#allocation5 + $0xc0] sm:$0xff] %v2089
    %2144 = vst [vmem:[#allocation5 + $0xc8] sm:$0xff] %v2092
    %2145 = vst [vmem:[#allocation5 + $0xd0] sm:$0xff] %v2097
    %2146 = vst [vmem:[#allocation5 + $0xd8] sm:$0xff] %v2100
    %2147 = vst [vmem:[#allocation5 + $0xe0] sm:$0xff] %v2105
    %2148 = vst [vmem:[#allocation5 + $0xe8] sm:$0xff] %v2108
    %2149 = vst [vmem:[#allocation5 + $0xf0] sm:$0xff] %v2113
    %2150 = vst [vmem:[#allocation5 + $0xf8] sm:$0xff] %v2116
    // Predicated region
    $region34: #{tpu_custom_call.1} parent=1 // pred_check
      _
    $region35: #{tpu_custom_call.1} parent=1 // pred_check_branch
      %2152 = sbr.rel (0) target = $region37
    $region36: #{tpu_custom_call.1} parent=1 // pred_region
      %s2154 = ssub.s32 4096, 4096
      %2155 = vsyncadd [#allocation4], %s2154
      %s2156 = sshll.u32 [#allocation5], 4
      %s2157 = int_to_ptr.vmem [resolvable:$true] %s2156
      %2162 = dma.vmem_to_hbm [thread:$0]  %s2157, 4096, %s7, [#allocation4], 128, 128, 8
    $region37: #{tpu_custom_call.1} parent=1 // pred_fallthru
      _
    // Predicated region
    $region38: #{tpu_custom_call.1} parent=1 // pred_check
      _
    $region39: #{tpu_custom_call.1} parent=1 // pred_check_branch
      %2164 = sbr.rel (0) target = $region41
    $region40: #{tpu_custom_call.1} parent=1 // pred_region
      %2165 = dma.done [#allocation4], 4096
    $region41: #{tpu_custom_call.1} parent=1 // pred_fallthru
      _
    %2166 = vsyncpa [#allocation3], 1
    %2167 = vsyncpa [#allocation4], 1

</llo_original>
